<compile_context>
chip_gen: v7x
topology: tpu7x:2x2x1
jax: 0.10.0
libtpu: 0.0.40
codegen_flags: <defaults>
</compile_context>

<pallas_src>
import functools

import jax
import jax.numpy as jnp
from jax.experimental import pallas as pl
from jax.experimental.pallas import tpu as pltpu

EPS = 1e-5  # torch.nn.LayerNorm default eps


# --------------------------- fused forward kernel ---------------------------
def fused_transformer_kernel(x_ref, wemb_ref, wlyr_ref, whead_ref, vec_ref,
                             out_ref, *, H, L, HH):
    TWOH = 2 * H
    FOURH = 4 * H
    PADW = out_ref.shape[1]
    inv_h = 1.0 / H

    def vrow(r, w):                     # one packed vector row, width w, as (1, w)
        return vec_ref[r:r + 1, 0:w]

    def mm(x, w):                       # weights pre-transposed to (in, out)
        return jnp.dot(x, w, preferred_element_type=jnp.float32)

    # lane mask: lanes [0, H) hold stream 1 (spectral), lanes [H, 2H) stream 2.
    left = jax.lax.broadcasted_iota(jnp.int32, (1, TWOH), 1) < H
    right = jnp.logical_not(left)

    def half_ln(t, keep, g, b):
        # LayerNorm over the H lanes selected by `keep`; other lanes pass through t.
        s = jnp.sum(jnp.where(keep, t, 0.0), axis=-1, keepdims=True)
        d = t - s * inv_h
        q = jnp.sum(jnp.where(keep, d * d, 0.0), axis=-1, keepdims=True)
        return jnp.where(keep, d * jax.lax.rsqrt(q * inv_h + EPS) * g + b, t)

    def dual_ln(t, g, b):
        # independent LayerNorms over the left H lanes and the right H lanes
        s_l = jnp.sum(jnp.where(left, t, 0.0), axis=-1, keepdims=True)
        s_a = jnp.sum(t, axis=-1, keepdims=True)
        d = t - jnp.where(left, s_l, s_a - s_l) * inv_h
        dd = d * d
        q_l = jnp.sum(jnp.where(left, dd, 0.0), axis=-1, keepdims=True)
        q_a = jnp.sum(dd, axis=-1, keepdims=True)
        var = jnp.where(left, q_l, q_a - q_l) * inv_h
        return d * jax.lax.rsqrt(var + EPS) * g + b

    # ---- embeddings: one block-diagonal GEMM -> [x1_emb | x2_emb] (pos-enc folded
    # into the bias row), then the two per-modality embedding LayerNorms ----
    xc = mm(x_ref[...], wemb_ref[...]) + vrow(0, TWOH)
    xc = dual_ln(xc, vrow(1, TWOH), vrow(2, TWOH))

    # ---- cross-attention layers (statically unrolled; L is small) ----
    # TODO(synk): switch to lax.fori_loop / a grid "arbitrary" layer axis with
    # weight streaming once L or H grow (vreg live ranges, v7x 64 MiB VMEM).
    for l in range(L):
        lb = l * 10 * H                              # row base in the layer weight slab
        r0 = 3 + 10 * l                              # row base in the vector slab
        a1w = wlyr_ref[lb:lb + TWOH, 0:TWOH]
        a2w = wlyr_ref[lb + TWOH:lb + 2 * TWOH, 0:TWOH]
        f1w = wlyr_ref[lb + 2 * TWOH:lb + 3 * TWOH, 0:FOURH]
        f2w = wlyr_ref[lb + 3 * TWOH:lb + 3 * TWOH + FOURH, 0:TWOH]

        # seq_len==1 MHA x1 <- x2, fused to out_proj(v_proj(x2)); lands in left lanes only
        t = xc + mm(xc, a1w) + vrow(r0 + 0, TWOH)
        xc = half_ln(t, left, vrow(r0 + 1, TWOH), vrow(r0 + 2, TWOH))
        # seq_len==1 MHA x2 <- (updated) x1; lands in right lanes only
        t = xc + mm(xc, a2w) + vrow(r0 + 3, TWOH)
        xc = half_ln(t, right, vrow(r0 + 4, TWOH), vrow(r0 + 5, TWOH))
        # shared FFN on both streams at once (block-diagonal weights) + shared norm3
        h = jnp.maximum(mm(xc, f1w) + vrow(r0 + 6, FOURH), 0.0)
        t = xc + mm(h, f2w) + vrow(r0 + 7, TWOH)
        xc = dual_ln(t, vrow(r0 + 8, TWOH), vrow(r0 + 9, TWOH))

    # ---- output heads ----
    # combined = [x1 | x2] is already xc; LayerNorm over all 2H lanes, per-head
    # gamma/beta folded into Linear1, heads stacked on columns, block-diag Linear2,
    # lane-dense (B, PADW) logits slab (full-width vst).
    mu = jnp.sum(xc, axis=-1, keepdims=True) * (1.0 / TWOH)
    d = xc - mu
    var = jnp.sum(d * d, axis=-1, keepdims=True) * (1.0 / TWOH)
    nrm = d * jax.lax.rsqrt(var + EPS)
    hid = jnp.maximum(mm(nrm, whead_ref[0:TWOH, 0:HH]) + vrow(3 + 10 * L, HH), 0.0)
    out_ref[...] = mm(hid, whead_ref[TWOH:TWOH + HH, 0:PADW]) + vrow(3 + 10 * L + 1, PADW)


# --------------------------- pallas_call wrapper ---------------------------
def simplified_transformer_forward(prep, spectral, metabolite):
    B = spectral.shape[0]
    H, L, HH, PAD = prep['H'], prep['L'], prep['HH'], prep['PAD']
    xin = jnp.concatenate([spectral.astype(jnp.float32),
                           metabolite.astype(jnp.float32)], axis=1)
    Din = xin.shape[1]

    # Batch tiling: single block at small B (grid == (1,)); tile/pad batch for
    # large B so the "parallel" grid axis can use both TensorCores on v7x.
    # Constant weight index_maps keep the weight slabs VMEM-resident across steps.
    TB = B if B <= 128 else 128
    Bp = ((B + TB - 1) // TB) * TB
    if Bp != B:
        xin = jnp.pad(xin, ((0, Bp - B), (0, 0)))

    kernel = functools.partial(fused_transformer_kernel, H=H, L=L, HH=HH)
    slab = pl.pallas_call(
        kernel,
        out_shape=jax.ShapeDtypeStruct((Bp, PAD), jnp.float32),
        grid=(Bp // TB,),
        in_specs=[
            pl.BlockSpec((TB, Din), lambda i: (i, 0)),
            pl.BlockSpec(prep['w_emb'].shape, lambda i: (0, 0)),
            pl.BlockSpec(prep['w_layers'].shape, lambda i: (0, 0)),
            pl.BlockSpec(prep['w_head'].shape, lambda i: (0, 0)),
            pl.BlockSpec(prep['vecs'].shape, lambda i: (0, 0)),
        ],
        out_specs=pl.BlockSpec((TB, PAD), lambda i: (i, 0)),
        compiler_params=pltpu.CompilerParams(
            dimension_semantics=("parallel",)),
        # TODO(synk): set vmem_limit_bytes / stream per-layer weights over an
        # "arbitrary" grid axis before scaling H/L toward the v7x 64 MiB VMEM
        # (or v5e's 16 MiB scoped default).
    )(xin, prep['w_emb'], prep['w_layers'], prep['w_head'], prep['vecs'])
    return {task: slab[:B, off:off + n]
            for task, (off, n) in prep['head_slices'].items()}


# ------------------ deterministic PyTorch-layout parameters ------------------
def init_params(key, spectral_dim, metabolite_dim, hidden_dim, num_layers, num_classes):
    """PyTorch-layout params: Linear weights (out, in), packed MHA in_proj (3H, H)
    ordered [q; k; v].  LayerNorm gamma/beta randomized so the host-side folding
    is actually exercised by the correctness check."""
    H = hidden_dim
    keys = iter(jax.random.split(key, 256))

    def nrm(shape, scale=0.05):
        return (scale * jax.random.normal(next(keys), shape)).astype(jnp.float32)

    def ln_g(n):
        return (1.0 + 0.05 * jax.random.normal(next(keys), (1, n))).astype(jnp.float32)

    def ln_b(n):
        return nrm((1, n))

    p = {
        'ws': nrm((H, spectral_dim)), 'bs': nrm((1, H)),
        'wm': nrm((H, metabolite_dim)), 'bm': nrm((1, H)),
        'pos_s': nrm((1, H), 0.02), 'pos_m': nrm((1, H), 0.02),
        'lns_g': ln_g(H), 'lns_b': ln_b(H),
        'lnm_g': ln_g(H), 'lnm_b': ln_b(H),
    }
    layers = []
    for _ in range(num_layers):
        layers.append(dict(
            a1_inw=nrm((3 * H, H)), a1_inb=nrm((1, 3 * H)),
            a1_ow=nrm((H, H)), a1_ob=nrm((1, H)),
            a2_inw=nrm((3 * H, H)), a2_inb=nrm((1, 3 * H)),
            a2_ow=nrm((H, H)), a2_ob=nrm((1, H)),
            n1g=ln_g(H), n1b=ln_b(H),
            n2g=ln_g(H), n2b=ln_b(H),
            n3g=ln_g(H), n3b=ln_b(H),
            f1w=nrm((2 * H, H)), f1b=nrm((1, 2 * H)),
            f2w=nrm((H, 2 * H)), f2b=nrm((1, H)),
        ))
    p['layers'] = layers
    heads = {}
    for task, n_class in num_classes.items():
        heads[task] = dict(
            lng=ln_g(2 * H), lnb=ln_b(2 * H),
            w1=nrm((H // 2, 2 * H)), b1=nrm((1, H // 2)),
            w2=nrm((n_class, H // 2)), b2=nrm((1, n_class)),
        )
    p['heads'] = heads
    return p


# ------------------------- host-side weight fusion / packing -------------------------
def prepare_params(raw, num_classes):
    """Build the 5 packed operands: block-diag embed weight, one per-layer weight
    slab (zero-padded attention + block-diag FFN), one head weight slab (LN folded
    into Linear1, block-diag Linear2), and one (R, W) vector slab holding every
    bias / gamma / beta row, statically indexed inside the kernel."""
    H = raw['ws'].shape[0]
    TWOH, FOURH = 2 * H, 4 * H
    D1, D2 = raw['ws'].shape[1], raw['wm'].shape[1]
    Din = D1 + D2
    L = len(raw['layers'])
    tasks = list(num_classes.keys())
    HH = len(tasks) * (H // 2)
    n_out = sum(num_classes.values())
    PAD = max(128, ((n_out + 127) // 128) * 128)    # lane-dense output slab width
    W = max(FOURH, PAD, HH)                          # vector slab width
    f32 = jnp.float32

    # block-diagonal embedding: [spectral | metabolite] @ w_emb = [x1_emb | x2_emb]
    w_emb = jnp.zeros((Din, TWOH), f32)
    w_emb = w_emb.at[:D1, :H].set(raw['ws'].T)
    w_emb = w_emb.at[D1:, H:].set(raw['wm'].T)

    def row(v, fill=0.0):
        v = jnp.asarray(v, f32).reshape(1, -1)
        return jnp.pad(v, ((0, 0), (0, W - v.shape[1])), constant_values=fill)

    zH = jnp.zeros((1, H), f32)
    oH = jnp.ones((1, H), f32)
    rows = [
        row(jnp.concatenate([raw['bs'] + raw['pos_s'], raw['bm'] + raw['pos_m']], 1)),
        row(jnp.concatenate([raw['lns_g'], raw['lnm_g']], 1), 1.0),
        row(jnp.concatenate([raw['lns_b'], raw['lnm_b']], 1)),
    ]

    def fuse_attn(in_w, in_b, out_w, out_b):
        # seq_len==1, no mask, eval-mode dropout: MHA(q, kv, kv) == out_proj(v_proj(kv))
        wv = in_w[2 * H:, :]              # v block of packed [q;k;v] in_proj (H, H)
        bv = in_b[:, 2 * H:]              # v bias (1, H)
        return (out_w @ wv).T, bv @ out_w.T + out_b   # (H,H) as (in,out), (1,H)

    blocks = []
    for lyr in raw['layers']:
        A1, b1 = fuse_attn(lyr['a1_inw'], lyr['a1_inb'], lyr['a1_ow'], lyr['a1_ob'])
        A2, b2 = fuse_attn(lyr['a2_inw'], lyr['a2_inb'], lyr['a2_ow'], lyr['a2_ob'])
        blk = jnp.zeros((10 * H, FOURH), f32)
        blk = blk.at[H:TWOH, 0:H].set(A1)                    # x2 lanes -> left-half output
        blk = blk.at[TWOH:TWOH + H, H:TWOH].set(A2)          # x1 lanes -> right-half output
        f1t = lyr['f1w'].T                                    # (H, 2H)
        blk = blk.at[2 * TWOH:2 * TWOH + H, 0:TWOH].set(f1t)
        blk = blk.at[2 * TWOH + H:3 * TWOH, TWOH:FOURH].set(f1t)
        f2t = lyr['f2w'].T                                    # (2H, H)
        blk = blk.at[3 * TWOH:3 * TWOH + TWOH, 0:H].set(f2t)
        blk = blk.at[3 * TWOH + TWOH:3 * TWOH + FOURH, H:TWOH].set(f2t)
        blocks.append(blk)
        rows += [
            row(jnp.concatenate([b1, zH], 1)),
            row(jnp.concatenate([lyr['n1g'], oH], 1), 1.0),
            row(jnp.concatenate([lyr['n1b'], zH], 1)),
            row(jnp.concatenate([zH, b2], 1)),
            row(jnp.concatenate([oH, lyr['n2g']], 1), 1.0),
            row(jnp.concatenate([zH, lyr['n2b']], 1)),
            row(jnp.concatenate([lyr['f1b'], lyr['f1b']], 1)),
            row(jnp.concatenate([lyr['f2b'], lyr['f2b']], 1)),
            row(jnp.concatenate([lyr['n3g'], lyr['n3g']], 1), 1.0),
            row(jnp.concatenate([lyr['n3b'], lyr['n3b']], 1)),
        ]
    w_layers = jnp.concatenate(blocks, axis=0)               # (L*10H, 4H)

    # output heads: fold LN gamma/beta into Linear1, stack heads on columns,
    # block-diagonal Linear2 padded to the lane-dense output width
    w1_cols, b1_cols, w2_blocks, b2_list = [], [], [], []
    head_slices = {}
    off = 0
    for task in tasks:
        hp = raw['heads'][task]
        w1t = hp['w1'].T                                      # (2H, H//2)
        w1_cols.append(hp['lng'].T * w1t)                     # fold gamma (row scale)
        b1_cols.append(hp['lnb'] @ w1t + hp['b1'])
        w2_blocks.append(hp['w2'].T)                          # (H//2, n_class)
        b2_list.append(hp['b2'])
        head_slices[task] = (off, num_classes[task])
        off += num_classes[task]
    HW = max(PAD, HH)
    w_head = jnp.zeros((TWOH + HH, HW), f32)
    w_head = w_head.at[:TWOH, :HH].set(jnp.concatenate(w1_cols, 1))
    b2_full = jnp.zeros((1, PAD), f32)
    r = c = 0
    for blk2, bb in zip(w2_blocks, b2_list):
        w_head = w_head.at[TWOH + r:TWOH + r + blk2.shape[0],
                           c:c + blk2.shape[1]].set(blk2)
        b2_full = b2_full.at[:, c:c + blk2.shape[1]].set(bb)
        r += blk2.shape[0]
        c += blk2.shape[1]
    rows.append(row(jnp.concatenate(b1_cols, 1)))
    rows.append(row(b2_full))
    vecs = jnp.concatenate(rows, axis=0)                      # (3 + 10L + 2, W)

    return dict(w_emb=w_emb, w_layers=w_layers, w_head=w_head, vecs=vecs,
                H=H, L=L, HH=HH, PAD=PAD, head_slices=head_slices)


# ------------------------- pure-JAX reference (torch semantics) -------------------------
def reference_forward(raw, spectral, metabolite):
    H = raw['ws'].shape[0]

    def ln(x, g, b):
        mu = x.mean(-1, keepdims=True)
        var = ((x - mu) ** 2).mean(-1, keepdims=True)
        return (x - mu) / jnp.sqrt(var + EPS) * g + b

    def lin(x, w, b):          # torch Linear: x @ W.T + b
        return x @ w.T + b

    x1 = ln(lin(spectral, raw['ws'], raw['bs']) + raw['pos_s'], raw['lns_g'], raw['lns_b'])
    x2 = ln(lin(metabolite, raw['wm'], raw['bm']) + raw['pos_m'], raw['lnm_g'], raw['lnm_b'])
    for lyr in raw['layers']:
        def mha(kv, inw, inb, ow, ob):
            # seq_len==1 => softmax over a single key == 1 for every head
            return lin(lin(kv, inw[2 * H:], inb[:, 2 * H:]), ow, ob)

        def ffn(x):
            return lin(jnp.maximum(lin(x, lyr['f1w'], lyr['f1b']), 0.0),
                       lyr['f2w'], lyr['f2b'])

        x1 = ln(x1 + mha(x2, lyr['a1_inw'], lyr['a1_inb'], lyr['a1_ow'], lyr['a1_ob']),
                lyr['n1g'], lyr['n1b'])
        x2 = ln(x2 + mha(x1, lyr['a2_inw'], lyr['a2_inb'], lyr['a2_ow'], lyr['a2_ob']),
                lyr['n2g'], lyr['n2b'])
        x1 = ln(x1 + ffn(x1), lyr['n3g'], lyr['n3b'])
        x2 = ln(x2 + ffn(x2), lyr['n3g'], lyr['n3b'])
    combined = jnp.concatenate([x1, x2], axis=1)
    outs = {}
    for task, hp in raw['heads'].items():
        h = ln(combined, hp['lng'], hp['lnb'])
        h = jnp.maximum(lin(h, hp['w1'], hp['b1']), 0.0)
        outs[task] = lin(h, hp['w2'], hp['b2'])
    return outs


if __name__ == "__main__":
    B = 8
    spectral_dim, metabolite_dim = 32, 24
    hidden_dim, num_heads, num_layers = 32, 4, 2   # num_heads is irrelevant at seq_len==1
    num_classes = {"cancer_type": 3, "stage": 5}

    key = jax.random.PRNGKey(0)
    kp, ks, km = jax.random.split(key, 3)
    raw = init_params(kp, spectral_dim, metabolite_dim, hidden_dim, num_layers, num_classes)
    prep = prepare_params(raw, num_classes)

    spectral = jax.random.normal(ks, (B, spectral_dim), jnp.float32)
    metabolite = jax.random.normal(km, (B, metabolite_dim), jnp.float32)

    run = jax.jit(functools.partial(simplified_transformer_forward, prep))
    out = jax.block_until_ready(run(spectral, metabolite))

    ref = jax.block_until_ready(reference_forward(raw, spectral, metabolite))
    for task, n_class in num_classes.items():
        assert out[task].shape == (B, n_class), (task, out[task].shape)
        assert out[task].dtype == jnp.float32
        err = float(jnp.max(jnp.abs(out[task] - ref[task])))
        assert jnp.allclose(out[task], ref[task], atol=1e-4, rtol=1e-4), (task, err)
    print("KERNEL_OK")
</pallas_src>

<mosaic_0001>
module attributes {stable_mosaic.version = 11 : i64} {
  func.func @fused_transformer_kernel(%arg0: i32, %arg1: memref<8x56xf32, #tpu.memory_space<vmem>>, %arg2: memref<56x64xf32, #tpu.memory_space<vmem>>, %arg3: memref<640x128xf32, #tpu.memory_space<vmem>>, %arg4: memref<96x128xf32, #tpu.memory_space<vmem>>, %arg5: memref<25x128xf32, #tpu.memory_space<vmem>>, %arg6: memref<8x128xf32, #tpu.memory_space<vmem>>) attributes {dimension_semantics = [#tpu.dimension_semantics<parallel>], iteration_bounds = array<i64: 1>, scalar_prefetch = 0 : i64, scratch_operands = 0 : i64, tpu.core_type = #tpu.core_type<tc>, window_params = [{transform_indices = @transform_0, window_bounds = array<i64: 8, 56>}, {pipeline_mode = #tpu.pipeline_mode<synchronous>, transform_indices = @transform_1, window_bounds = array<i64: 56, 64>}, {pipeline_mode = #tpu.pipeline_mode<synchronous>, transform_indices = @transform_2, window_bounds = array<i64: 640, 128>}, {pipeline_mode = #tpu.pipeline_mode<synchronous>, transform_indices = @transform_3, window_bounds = array<i64: 96, 128>}, {pipeline_mode = #tpu.pipeline_mode<synchronous>, transform_indices = @transform_4, window_bounds = array<i64: 25, 128>}, {transform_indices = @transform_5, window_bounds = array<i64: 8, 128>}]} {
    %0 = tpu.iota {dimensions = array<i32: 1>} : vector<1x64xi32>
    %c32_i32 = arith.constant 32 : i32
    %1 = vector.broadcast %c32_i32 : i32 to vector<1x64xi32>
    %2 = arith.cmpi slt, %0, %1 : vector<1x64xi32>
    %cst = arith.constant dense<true> : vector<1x64xi1>
    %3 = arith.xori %2, %cst : vector<1x64xi1>
    %c0 = arith.constant 0 : index
    %c0_0 = arith.constant 0 : index
    %4 = vector.load %arg1[%c0, %c0_0] : memref<8x56xf32, #tpu.memory_space<vmem>>, vector<8x56xf32>
    %c0_1 = arith.constant 0 : index
    %c0_2 = arith.constant 0 : index
    %5 = vector.load %arg2[%c0_1, %c0_2] : memref<56x64xf32, #tpu.memory_space<vmem>>, vector<56x64xf32>
    %cst_3 = arith.constant dense<0.000000e+00> : vector<8x64xf32>
    %6 = tpu.matmul %4, %5, %cst_3 {dimension_numbers = #tpu.dot_dimension_numbers<[1], [0], [0], [1], [0, 0, 1, 1], [], []>} : vector<8x56xf32>, vector<56x64xf32>, vector<8x64xf32> -> vector<8x64xf32>
    %c0_4 = arith.constant 0 : index
    %c0_5 = arith.constant 0 : index
    %7 = vector.load %arg5[%c0_4, %c0_5] : memref<25x128xf32, #tpu.memory_space<vmem>>, vector<1x64xf32>
    %8 = vector.broadcast %7 : vector<1x64xf32> to vector<8x64xf32>
    %9 = arith.addf %6, %8 : vector<8x64xf32>
    %c1 = arith.constant 1 : index
    %c0_6 = arith.constant 0 : index
    %10 = vector.load %arg5[%c1, %c0_6] : memref<25x128xf32, #tpu.memory_space<vmem>>, vector<1x64xf32>
    %c2 = arith.constant 2 : index
    %c0_7 = arith.constant 0 : index
    %11 = vector.load %arg5[%c2, %c0_7] : memref<25x128xf32, #tpu.memory_space<vmem>>, vector<1x64xf32>
    %cst_8 = arith.constant 0.000000e+00 : f32
    %12 = vector.shape_cast %2 : vector<1x64xi1> to vector<1x64xi1>
    %13 = vector.broadcast %12 : vector<1x64xi1> to vector<8x64xi1>
    %14 = vector.broadcast %cst_8 : f32 to vector<8x64xf32>
    %15 = arith.select %13, %9, %14 : vector<8x64xi1>, vector<8x64xf32>
    %cst_9 = arith.constant dense<0.000000e+00> : vector<8xf32>
    %16 = vector.multi_reduction <add>, %15, %cst_9 [1] : vector<8x64xf32> to vector<8xf32>
    %17 = vector.shape_cast %16 : vector<8xf32> to vector<8x1xf32>
    %cst_10 = arith.constant dense<0.000000e+00> : vector<8xf32>
    %18 = vector.multi_reduction <add>, %9, %cst_10 [1] : vector<8x64xf32> to vector<8xf32>
    %19 = vector.shape_cast %18 : vector<8xf32> to vector<8x1xf32>
    %20 = arith.subf %19, %17 : vector<8x1xf32>
    %21 = vector.shape_cast %2 : vector<1x64xi1> to vector<1x64xi1>
    %22 = vector.broadcast %21 : vector<1x64xi1> to vector<8x64xi1>
    %23 = vector.shape_cast %17 : vector<8x1xf32> to vector<8x1xf32>
    %24 = vector.broadcast %23 : vector<8x1xf32> to vector<8x64xf32>
    %25 = vector.shape_cast %20 : vector<8x1xf32> to vector<8x1xf32>
    %26 = vector.broadcast %25 : vector<8x1xf32> to vector<8x64xf32>
    %27 = arith.select %22, %24, %26 : vector<8x64xi1>, vector<8x64xf32>
    %cst_11 = arith.constant 3.125000e-02 : f32
    %28 = vector.broadcast %cst_11 : f32 to vector<8x64xf32>
    %29 = arith.mulf %27, %28 : vector<8x64xf32>
    %30 = arith.subf %9, %29 : vector<8x64xf32>
    %31 = arith.mulf %30, %30 : vector<8x64xf32>
    %cst_12 = arith.constant 0.000000e+00 : f32
    %32 = vector.shape_cast %2 : vector<1x64xi1> to vector<1x64xi1>
    %33 = vector.broadcast %32 : vector<1x64xi1> to vector<8x64xi1>
    %34 = vector.broadcast %cst_12 : f32 to vector<8x64xf32>
    %35 = arith.select %33, %31, %34 : vector<8x64xi1>, vector<8x64xf32>
    %cst_13 = arith.constant dense<0.000000e+00> : vector<8xf32>
    %36 = vector.multi_reduction <add>, %35, %cst_13 [1] : vector<8x64xf32> to vector<8xf32>
    %37 = vector.shape_cast %36 : vector<8xf32> to vector<8x1xf32>
    %cst_14 = arith.constant dense<0.000000e+00> : vector<8xf32>
    %38 = vector.multi_reduction <add>, %31, %cst_14 [1] : vector<8x64xf32> to vector<8xf32>
    %39 = vector.shape_cast %38 : vector<8xf32> to vector<8x1xf32>
    %40 = arith.subf %39, %37 : vector<8x1xf32>
    %41 = vector.shape_cast %2 : vector<1x64xi1> to vector<1x64xi1>
    %42 = vector.broadcast %41 : vector<1x64xi1> to vector<8x64xi1>
    %43 = vector.shape_cast %37 : vector<8x1xf32> to vector<8x1xf32>
    %44 = vector.broadcast %43 : vector<8x1xf32> to vector<8x64xf32>
    %45 = vector.shape_cast %40 : vector<8x1xf32> to vector<8x1xf32>
    %46 = vector.broadcast %45 : vector<8x1xf32> to vector<8x64xf32>
    %47 = arith.select %42, %44, %46 : vector<8x64xi1>, vector<8x64xf32>
    %cst_15 = arith.constant 3.125000e-02 : f32
    %48 = vector.broadcast %cst_15 : f32 to vector<8x64xf32>
    %49 = arith.mulf %47, %48 : vector<8x64xf32>
    %cst_16 = arith.constant 9.99999974E-6 : f32
    %50 = vector.broadcast %cst_16 : f32 to vector<8x64xf32>
    %51 = arith.addf %49, %50 : vector<8x64xf32>
    %52 = math.rsqrt %51 : vector<8x64xf32>
    %53 = arith.mulf %30, %52 : vector<8x64xf32>
    %54 = vector.broadcast %10 : vector<1x64xf32> to vector<8x64xf32>
    %55 = arith.mulf %53, %54 : vector<8x64xf32>
    %56 = vector.broadcast %11 : vector<1x64xf32> to vector<8x64xf32>
    %57 = arith.addf %55, %56 : vector<8x64xf32>
    %c0_17 = arith.constant 0 : index
    %c0_18 = arith.constant 0 : index
    %58 = vector.load %arg3[%c0_17, %c0_18] : memref<640x128xf32, #tpu.memory_space<vmem>>, vector<64x64xf32>
    %c64 = arith.constant 64 : index
    %c0_19 = arith.constant 0 : index
    %59 = vector.load %arg3[%c64, %c0_19] : memref<640x128xf32, #tpu.memory_space<vmem>>, vector<64x64xf32>
    %c128 = arith.constant 128 : index
    %c0_20 = arith.constant 0 : index
    %60 = vector.load %arg3[%c128, %c0_20] : memref<640x128xf32, #tpu.memory_space<vmem>>, vector<64x128xf32>
    %c192 = arith.constant 192 : index
    %c0_21 = arith.constant 0 : index
    %61 = vector.load %arg3[%c192, %c0_21] : memref<640x128xf32, #tpu.memory_space<vmem>>, vector<128x64xf32>
    %cst_22 = arith.constant dense<0.000000e+00> : vector<8x64xf32>
    %62 = tpu.matmul %57, %58, %cst_22 {dimension_numbers = #tpu.dot_dimension_numbers<[1], [0], [0], [1], [0, 0, 1, 1], [], []>} : vector<8x64xf32>, vector<64x64xf32>, vector<8x64xf32> -> vector<8x64xf32>
    %63 = arith.addf %57, %62 : vector<8x64xf32>
    %c3 = arith.constant 3 : index
    %c0_23 = arith.constant 0 : index
    %64 = vector.load %arg5[%c3, %c0_23] : memref<25x128xf32, #tpu.memory_space<vmem>>, vector<1x64xf32>
    %65 = vector.broadcast %64 : vector<1x64xf32> to vector<8x64xf32>
    %66 = arith.addf %63, %65 : vector<8x64xf32>
    %c4 = arith.constant 4 : index
    %c0_24 = arith.constant 0 : index
    %67 = vector.load %arg5[%c4, %c0_24] : memref<25x128xf32, #tpu.memory_space<vmem>>, vector<1x64xf32>
    %c5 = arith.constant 5 : index
    %c0_25 = arith.constant 0 : index
    %68 = vector.load %arg5[%c5, %c0_25] : memref<25x128xf32, #tpu.memory_space<vmem>>, vector<1x64xf32>
    %cst_26 = arith.constant 0.000000e+00 : f32
    %69 = vector.shape_cast %2 : vector<1x64xi1> to vector<1x64xi1>
    %70 = vector.broadcast %69 : vector<1x64xi1> to vector<8x64xi1>
    %71 = vector.broadcast %cst_26 : f32 to vector<8x64xf32>
    %72 = arith.select %70, %66, %71 : vector<8x64xi1>, vector<8x64xf32>
    %cst_27 = arith.constant dense<0.000000e+00> : vector<8xf32>
    %73 = vector.multi_reduction <add>, %72, %cst_27 [1] : vector<8x64xf32> to vector<8xf32>
    %74 = vector.shape_cast %73 : vector<8xf32> to vector<8x1xf32>
    %cst_28 = arith.constant 3.125000e-02 : f32
    %75 = vector.broadcast %cst_28 : f32 to vector<8x1xf32>
    %76 = arith.mulf %74, %75 : vector<8x1xf32>
    %77 = vector.broadcast %76 : vector<8x1xf32> to vector<8x64xf32>
    %78 = arith.subf %66, %77 : vector<8x64xf32>
    %79 = arith.mulf %78, %78 : vector<8x64xf32>
    %cst_29 = arith.constant 0.000000e+00 : f32
    %80 = vector.shape_cast %2 : vector<1x64xi1> to vector<1x64xi1>
    %81 = vector.broadcast %80 : vector<1x64xi1> to vector<8x64xi1>
    %82 = vector.broadcast %cst_29 : f32 to vector<8x64xf32>
    %83 = arith.select %81, %79, %82 : vector<8x64xi1>, vector<8x64xf32>
    %cst_30 = arith.constant dense<0.000000e+00> : vector<8xf32>
    %84 = vector.multi_reduction <add>, %83, %cst_30 [1] : vector<8x64xf32> to vector<8xf32>
    %85 = vector.shape_cast %84 : vector<8xf32> to vector<8x1xf32>
    %cst_31 = arith.constant 3.125000e-02 : f32
    %86 = vector.broadcast %cst_31 : f32 to vector<8x1xf32>
    %87 = arith.mulf %85, %86 : vector<8x1xf32>
    %cst_32 = arith.constant 9.99999974E-6 : f32
    %88 = vector.broadcast %cst_32 : f32 to vector<8x1xf32>
    %89 = arith.addf %87, %88 : vector<8x1xf32>
    %90 = math.rsqrt %89 : vector<8x1xf32>
    %91 = vector.broadcast %90 : vector<8x1xf32> to vector<8x64xf32>
    %92 = arith.mulf %78, %91 : vector<8x64xf32>
    %93 = vector.broadcast %67 : vector<1x64xf32> to vector<8x64xf32>
    %94 = arith.mulf %92, %93 : vector<8x64xf32>
    %95 = vector.broadcast %68 : vector<1x64xf32> to vector<8x64xf32>
    %96 = arith.addf %94, %95 : vector<8x64xf32>
    %97 = vector.shape_cast %2 : vector<1x64xi1> to vector<1x64xi1>
    %98 = vector.broadcast %97 : vector<1x64xi1> to vector<8x64xi1>
    %99 = arith.select %98, %96, %66 : vector<8x64xi1>, vector<8x64xf32>
    %cst_33 = arith.constant dense<0.000000e+00> : vector<8x64xf32>
    %100 = tpu.matmul %99, %59, %cst_33 {dimension_numbers = #tpu.dot_dimension_numbers<[1], [0], [0], [1], [0, 0, 1, 1], [], []>} : vector<8x64xf32>, vector<64x64xf32>, vector<8x64xf32> -> vector<8x64xf32>
    %101 = arith.addf %99, %100 : vector<8x64xf32>
    %c6 = arith.constant 6 : index
    %c0_34 = arith.constant 0 : index
    %102 = vector.load %arg5[%c6, %c0_34] : memref<25x128xf32, #tpu.memory_space<vmem>>, vector<1x64xf32>
    %103 = vector.broadcast %102 : vector<1x64xf32> to vector<8x64xf32>
    %104 = arith.addf %101, %103 : vector<8x64xf32>
    %c7 = arith.constant 7 : index
    %c0_35 = arith.constant 0 : index
    %105 = vector.load %arg5[%c7, %c0_35] : memref<25x128xf32, #tpu.memory_space<vmem>>, vector<1x64xf32>
    %c8 = arith.constant 8 : index
    %c0_36 = arith.constant 0 : index
    %106 = vector.load %arg5[%c8, %c0_36] : memref<25x128xf32, #tpu.memory_space<vmem>>, vector<1x64xf32>
    %cst_37 = arith.constant 0.000000e+00 : f32
    %107 = vector.shape_cast %3 : vector<1x64xi1> to vector<1x64xi1>
    %108 = vector.broadcast %107 : vector<1x64xi1> to vector<8x64xi1>
    %109 = vector.broadcast %cst_37 : f32 to vector<8x64xf32>
    %110 = arith.select %108, %104, %109 : vector<8x64xi1>, vector<8x64xf32>
    %cst_38 = arith.constant dense<0.000000e+00> : vector<8xf32>
    %111 = vector.multi_reduction <add>, %110, %cst_38 [1] : vector<8x64xf32> to vector<8xf32>
    %112 = vector.shape_cast %111 : vector<8xf32> to vector<8x1xf32>
    %cst_39 = arith.constant 3.125000e-02 : f32
    %113 = vector.broadcast %cst_39 : f32 to vector<8x1xf32>
    %114 = arith.mulf %112, %113 : vector<8x1xf32>
    %115 = vector.broadcast %114 : vector<8x1xf32> to vector<8x64xf32>
    %116 = arith.subf %104, %115 : vector<8x64xf32>
    %117 = arith.mulf %116, %116 : vector<8x64xf32>
    %cst_40 = arith.constant 0.000000e+00 : f32
    %118 = vector.shape_cast %3 : vector<1x64xi1> to vector<1x64xi1>
    %119 = vector.broadcast %118 : vector<1x64xi1> to vector<8x64xi1>
    %120 = vector.broadcast %cst_40 : f32 to vector<8x64xf32>
    %121 = arith.select %119, %117, %120 : vector<8x64xi1>, vector<8x64xf32>
    %cst_41 = arith.constant dense<0.000000e+00> : vector<8xf32>
    %122 = vector.multi_reduction <add>, %121, %cst_41 [1] : vector<8x64xf32> to vector<8xf32>
    %123 = vector.shape_cast %122 : vector<8xf32> to vector<8x1xf32>
    %cst_42 = arith.constant 3.125000e-02 : f32
    %124 = vector.broadcast %cst_42 : f32 to vector<8x1xf32>
    %125 = arith.mulf %123, %124 : vector<8x1xf32>
    %cst_43 = arith.constant 9.99999974E-6 : f32
    %126 = vector.broadcast %cst_43 : f32 to vector<8x1xf32>
    %127 = arith.addf %125, %126 : vector<8x1xf32>
    %128 = math.rsqrt %127 : vector<8x1xf32>
    %129 = vector.broadcast %128 : vector<8x1xf32> to vector<8x64xf32>
    %130 = arith.mulf %116, %129 : vector<8x64xf32>
    %131 = vector.broadcast %105 : vector<1x64xf32> to vector<8x64xf32>
    %132 = arith.mulf %130, %131 : vector<8x64xf32>
    %133 = vector.broadcast %106 : vector<1x64xf32> to vector<8x64xf32>
    %134 = arith.addf %132, %133 : vector<8x64xf32>
    %135 = vector.shape_cast %3 : vector<1x64xi1> to vector<1x64xi1>
    %136 = vector.broadcast %135 : vector<1x64xi1> to vector<8x64xi1>
    %137 = arith.select %136, %134, %104 : vector<8x64xi1>, vector<8x64xf32>
    %cst_44 = arith.constant dense<0.000000e+00> : vector<8x128xf32>
    %138 = tpu.matmul %137, %60, %cst_44 {dimension_numbers = #tpu.dot_dimension_numbers<[1], [0], [0], [1], [0, 0, 1, 1], [], []>} : vector<8x64xf32>, vector<64x128xf32>, vector<8x128xf32> -> vector<8x128xf32>
    %c9 = arith.constant 9 : index
    %c0_45 = arith.constant 0 : index
    %139 = vector.load %arg5[%c9, %c0_45] : memref<25x128xf32, #tpu.memory_space<vmem>>, vector<1x128xf32>
    %140 = vector.broadcast %139 : vector<1x128xf32> to vector<8x128xf32>
    %141 = arith.addf %138, %140 : vector<8x128xf32>
    %cst_46 = arith.constant 0.000000e+00 : f32
    %142 = vector.broadcast %cst_46 : f32 to vector<8x128xf32>
    %143 = arith.maximumf %141, %142 : vector<8x128xf32>
    %cst_47 = arith.constant dense<0.000000e+00> : vector<8x64xf32>
    %144 = tpu.matmul %143, %61, %cst_47 {dimension_numbers = #tpu.dot_dimension_numbers<[1], [0], [0], [1], [0, 0, 1, 1], [], []>} : vector<8x128xf32>, vector<128x64xf32>, vector<8x64xf32> -> vector<8x64xf32>
    %145 = arith.addf %137, %144 : vector<8x64xf32>
    %c10 = arith.constant 10 : index
    %c0_48 = arith.constant 0 : index
    %146 = vector.load %arg5[%c10, %c0_48] : memref<25x128xf32, #tpu.memory_space<vmem>>, vector<1x64xf32>
    %147 = vector.broadcast %146 : vector<1x64xf32> to vector<8x64xf32>
    %148 = arith.addf %145, %147 : vector<8x64xf32>
    %c11 = arith.constant 11 : index
    %c0_49 = arith.constant 0 : index
    %149 = vector.load %arg5[%c11, %c0_49] : memref<25x128xf32, #tpu.memory_space<vmem>>, vector<1x64xf32>
    %c12 = arith.constant 12 : index
    %c0_50 = arith.constant 0 : index
    %150 = vector.load %arg5[%c12, %c0_50] : memref<25x128xf32, #tpu.memory_space<vmem>>, vector<1x64xf32>
    %cst_51 = arith.constant 0.000000e+00 : f32
    %151 = vector.shape_cast %2 : vector<1x64xi1> to vector<1x64xi1>
    %152 = vector.broadcast %151 : vector<1x64xi1> to vector<8x64xi1>
    %153 = vector.broadcast %cst_51 : f32 to vector<8x64xf32>
    %154 = arith.select %152, %148, %153 : vector<8x64xi1>, vector<8x64xf32>
    %cst_52 = arith.constant dense<0.000000e+00> : vector<8xf32>
    %155 = vector.multi_reduction <add>, %154, %cst_52 [1] : vector<8x64xf32> to vector<8xf32>
    %156 = vector.shape_cast %155 : vector<8xf32> to vector<8x1xf32>
    %cst_53 = arith.constant dense<0.000000e+00> : vector<8xf32>
    %157 = vector.multi_reduction <add>, %148, %cst_53 [1] : vector<8x64xf32> to vector<8xf32>
    %158 = vector.shape_cast %157 : vector<8xf32> to vector<8x1xf32>
    %159 = arith.subf %158, %156 : vector<8x1xf32>
    %160 = vector.shape_cast %2 : vector<1x64xi1> to vector<1x64xi1>
    %161 = vector.broadcast %160 : vector<1x64xi1> to vector<8x64xi1>
    %162 = vector.shape_cast %156 : vector<8x1xf32> to vector<8x1xf32>
    %163 = vector.broadcast %162 : vector<8x1xf32> to vector<8x64xf32>
    %164 = vector.shape_cast %159 : vector<8x1xf32> to vector<8x1xf32>
    %165 = vector.broadcast %164 : vector<8x1xf32> to vector<8x64xf32>
    %166 = arith.select %161, %163, %165 : vector<8x64xi1>, vector<8x64xf32>
    %cst_54 = arith.constant 3.125000e-02 : f32
    %167 = vector.broadcast %cst_54 : f32 to vector<8x64xf32>
    %168 = arith.mulf %166, %167 : vector<8x64xf32>
    %169 = arith.subf %148, %168 : vector<8x64xf32>
    %170 = arith.mulf %169, %169 : vector<8x64xf32>
    %cst_55 = arith.constant 0.000000e+00 : f32
    %171 = vector.shape_cast %2 : vector<1x64xi1> to vector<1x64xi1>
    %172 = vector.broadcast %171 : vector<1x64xi1> to vector<8x64xi1>
    %173 = vector.broadcast %cst_55 : f32 to vector<8x64xf32>
    %174 = arith.select %172, %170, %173 : vector<8x64xi1>, vector<8x64xf32>
    %cst_56 = arith.constant dense<0.000000e+00> : vector<8xf32>
    %175 = vector.multi_reduction <add>, %174, %cst_56 [1] : vector<8x64xf32> to vector<8xf32>
    %176 = vector.shape_cast %175 : vector<8xf32> to vector<8x1xf32>
    %cst_57 = arith.constant dense<0.000000e+00> : vector<8xf32>
    %177 = vector.multi_reduction <add>, %170, %cst_57 [1] : vector<8x64xf32> to vector<8xf32>
    %178 = vector.shape_cast %177 : vector<8xf32> to vector<8x1xf32>
    %179 = arith.subf %178, %176 : vector<8x1xf32>
    %180 = vector.shape_cast %2 : vector<1x64xi1> to vector<1x64xi1>
    %181 = vector.broadcast %180 : vector<1x64xi1> to vector<8x64xi1>
    %182 = vector.shape_cast %176 : vector<8x1xf32> to vector<8x1xf32>
    %183 = vector.broadcast %182 : vector<8x1xf32> to vector<8x64xf32>
    %184 = vector.shape_cast %179 : vector<8x1xf32> to vector<8x1xf32>
    %185 = vector.broadcast %184 : vector<8x1xf32> to vector<8x64xf32>
    %186 = arith.select %181, %183, %185 : vector<8x64xi1>, vector<8x64xf32>
    %cst_58 = arith.constant 3.125000e-02 : f32
    %187 = vector.broadcast %cst_58 : f32 to vector<8x64xf32>
    %188 = arith.mulf %186, %187 : vector<8x64xf32>
    %cst_59 = arith.constant 9.99999974E-6 : f32
    %189 = vector.broadcast %cst_59 : f32 to vector<8x64xf32>
    %190 = arith.addf %188, %189 : vector<8x64xf32>
    %191 = math.rsqrt %190 : vector<8x64xf32>
    %192 = arith.mulf %169, %191 : vector<8x64xf32>
    %193 = vector.broadcast %149 : vector<1x64xf32> to vector<8x64xf32>
    %194 = arith.mulf %192, %193 : vector<8x64xf32>
    %195 = vector.broadcast %150 : vector<1x64xf32> to vector<8x64xf32>
    %196 = arith.addf %194, %195 : vector<8x64xf32>
    %c320 = arith.constant 320 : index
    %c0_60 = arith.constant 0 : index
    %197 = vector.load %arg3[%c320, %c0_60] : memref<640x128xf32, #tpu.memory_space<vmem>>, vector<64x64xf32>
    %c384 = arith.constant 384 : index
    %c0_61 = arith.constant 0 : index
    %198 = vector.load %arg3[%c384, %c0_61] : memref<640x128xf32, #tpu.memory_space<vmem>>, vector<64x64xf32>
    %c448 = arith.constant 448 : index
    %c0_62 = arith.constant 0 : index
    %199 = vector.load %arg3[%c448, %c0_62] : memref<640x128xf32, #tpu.memory_space<vmem>>, vector<64x128xf32>
    %c512 = arith.constant 512 : index
    %c0_63 = arith.constant 0 : index
    %200 = vector.load %arg3[%c512, %c0_63] : memref<640x128xf32, #tpu.memory_space<vmem>>, vector<128x64xf32>
    %cst_64 = arith.constant dense<0.000000e+00> : vector<8x64xf32>
    %201 = tpu.matmul %196, %197, %cst_64 {dimension_numbers = #tpu.dot_dimension_numbers<[1], [0], [0], [1], [0, 0, 1, 1], [], []>} : vector<8x64xf32>, vector<64x64xf32>, vector<8x64xf32> -> vector<8x64xf32>
    %202 = arith.addf %196, %201 : vector<8x64xf32>
    %c13 = arith.constant 13 : index
    %c0_65 = arith.constant 0 : index
    %203 = vector.load %arg5[%c13, %c0_65] : memref<25x128xf32, #tpu.memory_space<vmem>>, vector<1x64xf32>
    %204 = vector.broadcast %203 : vector<1x64xf32> to vector<8x64xf32>
    %205 = arith.addf %202, %204 : vector<8x64xf32>
    %c14 = arith.constant 14 : index
    %c0_66 = arith.constant 0 : index
    %206 = vector.load %arg5[%c14, %c0_66] : memref<25x128xf32, #tpu.memory_space<vmem>>, vector<1x64xf32>
    %c15 = arith.constant 15 : index
    %c0_67 = arith.constant 0 : index
    %207 = vector.load %arg5[%c15, %c0_67] : memref<25x128xf32, #tpu.memory_space<vmem>>, vector<1x64xf32>
    %cst_68 = arith.constant 0.000000e+00 : f32
    %208 = vector.shape_cast %2 : vector<1x64xi1> to vector<1x64xi1>
    %209 = vector.broadcast %208 : vector<1x64xi1> to vector<8x64xi1>
    %210 = vector.broadcast %cst_68 : f32 to vector<8x64xf32>
    %211 = arith.select %209, %205, %210 : vector<8x64xi1>, vector<8x64xf32>
    %cst_69 = arith.constant dense<0.000000e+00> : vector<8xf32>
    %212 = vector.multi_reduction <add>, %211, %cst_69 [1] : vector<8x64xf32> to vector<8xf32>
    %213 = vector.shape_cast %212 : vector<8xf32> to vector<8x1xf32>
    %cst_70 = arith.constant 3.125000e-02 : f32
    %214 = vector.broadcast %cst_70 : f32 to vector<8x1xf32>
    %215 = arith.mulf %213, %214 : vector<8x1xf32>
    %216 = vector.broadcast %215 : vector<8x1xf32> to vector<8x64xf32>
    %217 = arith.subf %205, %216 : vector<8x64xf32>
    %218 = arith.mulf %217, %217 : vector<8x64xf32>
    %cst_71 = arith.constant 0.000000e+00 : f32
    %219 = vector.shape_cast %2 : vector<1x64xi1> to vector<1x64xi1>
    %220 = vector.broadcast %219 : vector<1x64xi1> to vector<8x64xi1>
    %221 = vector.broadcast %cst_71 : f32 to vector<8x64xf32>
    %222 = arith.select %220, %218, %221 : vector<8x64xi1>, vector<8x64xf32>
    %cst_72 = arith.constant dense<0.000000e+00> : vector<8xf32>
    %223 = vector.multi_reduction <add>, %222, %cst_72 [1] : vector<8x64xf32> to vector<8xf32>
    %224 = vector.shape_cast %223 : vector<8xf32> to vector<8x1xf32>
    %cst_73 = arith.constant 3.125000e-02 : f32
    %225 = vector.broadcast %cst_73 : f32 to vector<8x1xf32>
    %226 = arith.mulf %224, %225 : vector<8x1xf32>
    %cst_74 = arith.constant 9.99999974E-6 : f32
    %227 = vector.broadcast %cst_74 : f32 to vector<8x1xf32>
    %228 = arith.addf %226, %227 : vector<8x1xf32>
    %229 = math.rsqrt %228 : vector<8x1xf32>
    %230 = vector.broadcast %229 : vector<8x1xf32> to vector<8x64xf32>
    %231 = arith.mulf %217, %230 : vector<8x64xf32>
    %232 = vector.broadcast %206 : vector<1x64xf32> to vector<8x64xf32>
    %233 = arith.mulf %231, %232 : vector<8x64xf32>
    %234 = vector.broadcast %207 : vector<1x64xf32> to vector<8x64xf32>
    %235 = arith.addf %233, %234 : vector<8x64xf32>
    %236 = vector.shape_cast %2 : vector<1x64xi1> to vector<1x64xi1>
    %237 = vector.broadcast %236 : vector<1x64xi1> to vector<8x64xi1>
    %238 = arith.select %237, %235, %205 : vector<8x64xi1>, vector<8x64xf32>
    %cst_75 = arith.constant dense<0.000000e+00> : vector<8x64xf32>
    %239 = tpu.matmul %238, %198, %cst_75 {dimension_numbers = #tpu.dot_dimension_numbers<[1], [0], [0], [1], [0, 0, 1, 1], [], []>} : vector<8x64xf32>, vector<64x64xf32>, vector<8x64xf32> -> vector<8x64xf32>
    %240 = arith.addf %238, %239 : vector<8x64xf32>
    %c16 = arith.constant 16 : index
    %c0_76 = arith.constant 0 : index
    %241 = vector.load %arg5[%c16, %c0_76] : memref<25x128xf32, #tpu.memory_space<vmem>>, vector<1x64xf32>
    %242 = vector.broadcast %241 : vector<1x64xf32> to vector<8x64xf32>
    %243 = arith.addf %240, %242 : vector<8x64xf32>
    %c17 = arith.constant 17 : index
    %c0_77 = arith.constant 0 : index
    %244 = vector.load %arg5[%c17, %c0_77] : memref<25x128xf32, #tpu.memory_space<vmem>>, vector<1x64xf32>
    %c18 = arith.constant 18 : index
    %c0_78 = arith.constant 0 : index
    %245 = vector.load %arg5[%c18, %c0_78] : memref<25x128xf32, #tpu.memory_space<vmem>>, vector<1x64xf32>
    %cst_79 = arith.constant 0.000000e+00 : f32
    %246 = vector.shape_cast %3 : vector<1x64xi1> to vector<1x64xi1>
    %247 = vector.broadcast %246 : vector<1x64xi1> to vector<8x64xi1>
    %248 = vector.broadcast %cst_79 : f32 to vector<8x64xf32>
    %249 = arith.select %247, %243, %248 : vector<8x64xi1>, vector<8x64xf32>
    %cst_80 = arith.constant dense<0.000000e+00> : vector<8xf32>
    %250 = vector.multi_reduction <add>, %249, %cst_80 [1] : vector<8x64xf32> to vector<8xf32>
    %251 = vector.shape_cast %250 : vector<8xf32> to vector<8x1xf32>
    %cst_81 = arith.constant 3.125000e-02 : f32
    %252 = vector.broadcast %cst_81 : f32 to vector<8x1xf32>
    %253 = arith.mulf %251, %252 : vector<8x1xf32>
    %254 = vector.broadcast %253 : vector<8x1xf32> to vector<8x64xf32>
    %255 = arith.subf %243, %254 : vector<8x64xf32>
    %256 = arith.mulf %255, %255 : vector<8x64xf32>
    %cst_82 = arith.constant 0.000000e+00 : f32
    %257 = vector.shape_cast %3 : vector<1x64xi1> to vector<1x64xi1>
    %258 = vector.broadcast %257 : vector<1x64xi1> to vector<8x64xi1>
    %259 = vector.broadcast %cst_82 : f32 to vector<8x64xf32>
    %260 = arith.select %258, %256, %259 : vector<8x64xi1>, vector<8x64xf32>
    %cst_83 = arith.constant dense<0.000000e+00> : vector<8xf32>
    %261 = vector.multi_reduction <add>, %260, %cst_83 [1] : vector<8x64xf32> to vector<8xf32>
    %262 = vector.shape_cast %261 : vector<8xf32> to vector<8x1xf32>
    %cst_84 = arith.constant 3.125000e-02 : f32
    %263 = vector.broadcast %cst_84 : f32 to vector<8x1xf32>
    %264 = arith.mulf %262, %263 : vector<8x1xf32>
    %cst_85 = arith.constant 9.99999974E-6 : f32
    %265 = vector.broadcast %cst_85 : f32 to vector<8x1xf32>
    %266 = arith.addf %264, %265 : vector<8x1xf32>
    %267 = math.rsqrt %266 : vector<8x1xf32>
    %268 = vector.broadcast %267 : vector<8x1xf32> to vector<8x64xf32>
    %269 = arith.mulf %255, %268 : vector<8x64xf32>
    %270 = vector.broadcast %244 : vector<1x64xf32> to vector<8x64xf32>
    %271 = arith.mulf %269, %270 : vector<8x64xf32>
    %272 = vector.broadcast %245 : vector<1x64xf32> to vector<8x64xf32>
    %273 = arith.addf %271, %272 : vector<8x64xf32>
    %274 = vector.shape_cast %3 : vector<1x64xi1> to vector<1x64xi1>
    %275 = vector.broadcast %274 : vector<1x64xi1> to vector<8x64xi1>
    %276 = arith.select %275, %273, %243 : vector<8x64xi1>, vector<8x64xf32>
    %cst_86 = arith.constant dense<0.000000e+00> : vector<8x128xf32>
    %277 = tpu.matmul %276, %199, %cst_86 {dimension_numbers = #tpu.dot_dimension_numbers<[1], [0], [0], [1], [0, 0, 1, 1], [], []>} : vector<8x64xf32>, vector<64x128xf32>, vector<8x128xf32> -> vector<8x128xf32>
    %c19 = arith.constant 19 : index
    %c0_87 = arith.constant 0 : index
    %278 = vector.load %arg5[%c19, %c0_87] : memref<25x128xf32, #tpu.memory_space<vmem>>, vector<1x128xf32>
    %279 = vector.broadcast %278 : vector<1x128xf32> to vector<8x128xf32>
    %280 = arith.addf %277, %279 : vector<8x128xf32>
    %cst_88 = arith.constant 0.000000e+00 : f32
    %281 = vector.broadcast %cst_88 : f32 to vector<8x128xf32>
    %282 = arith.maximumf %280, %281 : vector<8x128xf32>
    %cst_89 = arith.constant dense<0.000000e+00> : vector<8x64xf32>
    %283 = tpu.matmul %282, %200, %cst_89 {dimension_numbers = #tpu.dot_dimension_numbers<[1], [0], [0], [1], [0, 0, 1, 1], [], []>} : vector<8x128xf32>, vector<128x64xf32>, vector<8x64xf32> -> vector<8x64xf32>
    %284 = arith.addf %276, %283 : vector<8x64xf32>
    %c20 = arith.constant 20 : index
    %c0_90 = arith.constant 0 : index
    %285 = vector.load %arg5[%c20, %c0_90] : memref<25x128xf32, #tpu.memory_space<vmem>>, vector<1x64xf32>
    %286 = vector.broadcast %285 : vector<1x64xf32> to vector<8x64xf32>
    %287 = arith.addf %284, %286 : vector<8x64xf32>
    %c21 = arith.constant 21 : index
    %c0_91 = arith.constant 0 : index
    %288 = vector.load %arg5[%c21, %c0_91] : memref<25x128xf32, #tpu.memory_space<vmem>>, vector<1x64xf32>
    %c22 = arith.constant 22 : index
    %c0_92 = arith.constant 0 : index
    %289 = vector.load %arg5[%c22, %c0_92] : memref<25x128xf32, #tpu.memory_space<vmem>>, vector<1x64xf32>
    %cst_93 = arith.constant 0.000000e+00 : f32
    %290 = vector.shape_cast %2 : vector<1x64xi1> to vector<1x64xi1>
    %291 = vector.broadcast %290 : vector<1x64xi1> to vector<8x64xi1>
    %292 = vector.broadcast %cst_93 : f32 to vector<8x64xf32>
    %293 = arith.select %291, %287, %292 : vector<8x64xi1>, vector<8x64xf32>
    %cst_94 = arith.constant dense<0.000000e+00> : vector<8xf32>
    %294 = vector.multi_reduction <add>, %293, %cst_94 [1] : vector<8x64xf32> to vector<8xf32>
    %295 = vector.shape_cast %294 : vector<8xf32> to vector<8x1xf32>
    %cst_95 = arith.constant dense<0.000000e+00> : vector<8xf32>
    %296 = vector.multi_reduction <add>, %287, %cst_95 [1] : vector<8x64xf32> to vector<8xf32>
    %297 = vector.shape_cast %296 : vector<8xf32> to vector<8x1xf32>
    %298 = arith.subf %297, %295 : vector<8x1xf32>
    %299 = vector.shape_cast %2 : vector<1x64xi1> to vector<1x64xi1>
    %300 = vector.broadcast %299 : vector<1x64xi1> to vector<8x64xi1>
    %301 = vector.shape_cast %295 : vector<8x1xf32> to vector<8x1xf32>
    %302 = vector.broadcast %301 : vector<8x1xf32> to vector<8x64xf32>
    %303 = vector.shape_cast %298 : vector<8x1xf32> to vector<8x1xf32>
    %304 = vector.broadcast %303 : vector<8x1xf32> to vector<8x64xf32>
    %305 = arith.select %300, %302, %304 : vector<8x64xi1>, vector<8x64xf32>
    %cst_96 = arith.constant 3.125000e-02 : f32
    %306 = vector.broadcast %cst_96 : f32 to vector<8x64xf32>
    %307 = arith.mulf %305, %306 : vector<8x64xf32>
    %308 = arith.subf %287, %307 : vector<8x64xf32>
    %309 = arith.mulf %308, %308 : vector<8x64xf32>
    %cst_97 = arith.constant 0.000000e+00 : f32
    %310 = vector.shape_cast %2 : vector<1x64xi1> to vector<1x64xi1>
    %311 = vector.broadcast %310 : vector<1x64xi1> to vector<8x64xi1>
    %312 = vector.broadcast %cst_97 : f32 to vector<8x64xf32>
    %313 = arith.select %311, %309, %312 : vector<8x64xi1>, vector<8x64xf32>
    %cst_98 = arith.constant dense<0.000000e+00> : vector<8xf32>
    %314 = vector.multi_reduction <add>, %313, %cst_98 [1] : vector<8x64xf32> to vector<8xf32>
    %315 = vector.shape_cast %314 : vector<8xf32> to vector<8x1xf32>
    %cst_99 = arith.constant dense<0.000000e+00> : vector<8xf32>
    %316 = vector.multi_reduction <add>, %309, %cst_99 [1] : vector<8x64xf32> to vector<8xf32>
    %317 = vector.shape_cast %316 : vector<8xf32> to vector<8x1xf32>
    %318 = arith.subf %317, %315 : vector<8x1xf32>
    %319 = vector.shape_cast %2 : vector<1x64xi1> to vector<1x64xi1>
    %320 = vector.broadcast %319 : vector<1x64xi1> to vector<8x64xi1>
    %321 = vector.shape_cast %315 : vector<8x1xf32> to vector<8x1xf32>
    %322 = vector.broadcast %321 : vector<8x1xf32> to vector<8x64xf32>
    %323 = vector.shape_cast %318 : vector<8x1xf32> to vector<8x1xf32>
    %324 = vector.broadcast %323 : vector<8x1xf32> to vector<8x64xf32>
    %325 = arith.select %320, %322, %324 : vector<8x64xi1>, vector<8x64xf32>
    %cst_100 = arith.constant 3.125000e-02 : f32
    %326 = vector.broadcast %cst_100 : f32 to vector<8x64xf32>
    %327 = arith.mulf %325, %326 : vector<8x64xf32>
    %cst_101 = arith.constant 9.99999974E-6 : f32
    %328 = vector.broadcast %cst_101 : f32 to vector<8x64xf32>
    %329 = arith.addf %327, %328 : vector<8x64xf32>
    %330 = math.rsqrt %329 : vector<8x64xf32>
    %331 = arith.mulf %308, %330 : vector<8x64xf32>
    %332 = vector.broadcast %288 : vector<1x64xf32> to vector<8x64xf32>
    %333 = arith.mulf %331, %332 : vector<8x64xf32>
    %334 = vector.broadcast %289 : vector<1x64xf32> to vector<8x64xf32>
    %335 = arith.addf %333, %334 : vector<8x64xf32>
    %cst_102 = arith.constant dense<0.000000e+00> : vector<8xf32>
    %336 = vector.multi_reduction <add>, %335, %cst_102 [1] : vector<8x64xf32> to vector<8xf32>
    %337 = vector.shape_cast %336 : vector<8xf32> to vector<8x1xf32>
    %cst_103 = arith.constant 1.562500e-02 : f32
    %338 = vector.broadcast %cst_103 : f32 to vector<8x1xf32>
    %339 = arith.mulf %337, %338 : vector<8x1xf32>
    %340 = vector.broadcast %339 : vector<8x1xf32> to vector<8x64xf32>
    %341 = arith.subf %335, %340 : vector<8x64xf32>
    %342 = arith.mulf %341, %341 : vector<8x64xf32>
    %cst_104 = arith.constant dense<0.000000e+00> : vector<8xf32>
    %343 = vector.multi_reduction <add>, %342, %cst_104 [1] : vector<8x64xf32> to vector<8xf32>
    %344 = vector.shape_cast %343 : vector<8xf32> to vector<8x1xf32>
    %cst_105 = arith.constant 1.562500e-02 : f32
    %345 = vector.broadcast %cst_105 : f32 to vector<8x1xf32>
    %346 = arith.mulf %344, %345 : vector<8x1xf32>
    %cst_106 = arith.constant 9.99999974E-6 : f32
    %347 = vector.broadcast %cst_106 : f32 to vector<8x1xf32>
    %348 = arith.addf %346, %347 : vector<8x1xf32>
    %349 = math.rsqrt %348 : vector<8x1xf32>
    %350 = vector.broadcast %349 : vector<8x1xf32> to vector<8x64xf32>
    %351 = arith.mulf %341, %350 : vector<8x64xf32>
    %c0_107 = arith.constant 0 : index
    %c0_108 = arith.constant 0 : index
    %352 = vector.load %arg4[%c0_107, %c0_108] : memref<96x128xf32, #tpu.memory_space<vmem>>, vector<64x32xf32>
    %cst_109 = arith.constant dense<0.000000e+00> : vector<8x32xf32>
    %353 = tpu.matmul %351, %352, %cst_109 {dimension_numbers = #tpu.dot_dimension_numbers<[1], [0], [0], [1], [0, 0, 1, 1], [], []>} : vector<8x64xf32>, vector<64x32xf32>, vector<8x32xf32> -> vector<8x32xf32>
    %c23 = arith.constant 23 : index
    %c0_110 = arith.constant 0 : index
    %354 = vector.load %arg5[%c23, %c0_110] : memref<25x128xf32, #tpu.memory_space<vmem>>, vector<1x32xf32>
    %355 = vector.broadcast %354 : vector<1x32xf32> to vector<8x32xf32>
    %356 = arith.addf %353, %355 : vector<8x32xf32>
    %cst_111 = arith.constant 0.000000e+00 : f32
    %357 = vector.broadcast %cst_111 : f32 to vector<8x32xf32>
    %358 = arith.maximumf %356, %357 : vector<8x32xf32>
    %c64_112 = arith.constant 64 : index
    %c0_113 = arith.constant 0 : index
    %359 = vector.load %arg4[%c64_112, %c0_113] : memref<96x128xf32, #tpu.memory_space<vmem>>, vector<32x128xf32>
    %cst_114 = arith.constant dense<0.000000e+00> : vector<8x128xf32>
    %360 = tpu.matmul %358, %359, %cst_114 {dimension_numbers = #tpu.dot_dimension_numbers<[1], [0], [0], [1], [0, 0, 1, 1], [], []>} : vector<8x32xf32>, vector<32x128xf32>, vector<8x128xf32> -> vector<8x128xf32>
    %c24 = arith.constant 24 : index
    %c0_115 = arith.constant 0 : index
    %361 = vector.load %arg5[%c24, %c0_115] : memref<25x128xf32, #tpu.memory_space<vmem>>, vector<1x128xf32>
    %362 = vector.broadcast %361 : vector<1x128xf32> to vector<8x128xf32>
    %363 = arith.addf %360, %362 : vector<8x128xf32>
    %c0_116 = arith.constant 0 : index
    %c0_117 = arith.constant 0 : index
    %364 = vector.load %arg6[%c0_116, %c0_117] : memref<8x128xf32, #tpu.memory_space<vmem>>, vector<8x128xf32>
    tpu.vector_store %arg6[%c0_116, %c0_117], %363 {strides = array<i32>} : memref<8x128xf32, #tpu.memory_space<vmem>>, vector<8x128xf32>,
    return
  }
  func.func @transform_0(%arg0: i32) -> (i32, i32) {
    %c0_i32 = arith.constant 0 : i32
    %c0_i32_0 = arith.constant 0 : i32
    return %arg0, %c0_i32 : i32, i32
  }
  func.func @transform_1(%arg0: i32) -> (i32, i32) {
    %c0_i32 = arith.constant 0 : i32
    %c0_i32_0 = arith.constant 0 : i32
    %c0_i32_1 = arith.constant 0 : i32
    return %c0_i32, %c0_i32_0 : i32, i32
  }
  func.func @transform_2(%arg0: i32) -> (i32, i32) {
    %c0_i32 = arith.constant 0 : i32
    %c0_i32_0 = arith.constant 0 : i32
    %c0_i32_1 = arith.constant 0 : i32
    return %c0_i32, %c0_i32_0 : i32, i32
  }
  func.func @transform_3(%arg0: i32) -> (i32, i32) {
    %c0_i32 = arith.constant 0 : i32
    %c0_i32_0 = arith.constant 0 : i32
    %c0_i32_1 = arith.constant 0 : i32
    return %c0_i32, %c0_i32_0 : i32, i32
  }
  func.func @transform_4(%arg0: i32) -> (i32, i32) {
    %c0_i32 = arith.constant 0 : i32
    %c0_i32_0 = arith.constant 0 : i32
    %c0_i32_1 = arith.constant 0 : i32
    return %c0_i32, %c0_i32_0 : i32, i32
  }
  func.func @transform_5(%arg0: i32) -> (i32, i32) {
    %c0_i32 = arith.constant 0 : i32
    %c0_i32_0 = arith.constant 0 : i32
    return %arg0, %c0_i32 : i32, i32
  }
}

</mosaic_0001>

<llo_original>
// kernel: simplified_transformer_forward.1
$region0: #{simplified_transformer_forward.1}
  #allocation0 [shape = 'u32[]', space=smem, size = 0x4, offset = 0x4, fixed_abs, tag = 'smem constant byte address 0x4 - core index']
  #allocation1 [shape = 'u32[144,128]{1,0:T(1,128)}', space=vmem, size = 0x12000, scoped, tag = 'internal scratch']
  %s0 = inlined_call_operand.vmem [shape: f32[8,56], index: 0, kind: input, shape index: {}]
  %s1 = inlined_call_operand.hbm [shape: f32[56,64], index: 1, kind: input, shape index: {}]
  %s2 = inlined_call_operand.hbm [shape: f32[640,128], index: 2, kind: input, shape index: {}]
  %s3 = inlined_call_operand.hbm [shape: f32[96,128], index: 3, kind: input, shape index: {}]
  %s4 = inlined_call_operand.vmem [shape: f32[25,128], index: 4, kind: input, shape index: {}]
  %s5 = inlined_call_operand.vmem [shape: f32[8,128], index: 5, kind: output, shape index: {}]
  %s6 = sld [smem:[#allocation0]]
  $region42: #{simplified_transformer_forward.1} parent=0
    _
  %s8 = ssub.s32 1, %s6
  %s9 = scalar_select 0, %s8, %s6
  $region1: #{simplified_transformer_forward.1} parent=0
    #allocation2 [shape = 'u8[28672]{0}', space=vmem, size = 0x7000, scoped, tag = 'input window, operand 1, single buffered']
    #allocation3 [shape = 's32[1]{0}', space=sflag, size = 0x4, scoped, tag = 'scoped memory for simplified_transformer_forward.1']
    #allocation4 [shape = 'u8[327680]{0}', space=vmem, size = 0x50000, scoped, tag = 'input window, operand 2, single buffered']
    #allocation5 [shape = 's32[1]{0}', space=sflag, size = 0x4, scoped, tag = 'scoped memory for simplified_transformer_forward.1']
    #allocation6 [shape = 'u8[49152]{0}', space=vmem, size = 0xc000, scoped, tag = 'input window, operand 3, single buffered']
    %10 = vsyncpa [#allocation3], 0
    %11 = vsyncpa [#allocation5], 0
    // Predicated region
    $region2: #{simplified_transformer_forward.1} parent=1 // pred_check
      _
    $region3: #{simplified_transformer_forward.1} parent=1 // pred_check_branch
      %13 = sbr.rel (0) target = $region5
    $region4: #{simplified_transformer_forward.1} parent=1 // pred_region
      _
    $region5: #{simplified_transformer_forward.1} parent=1 // pred_fallthru
      _
    // Predicated region
    $region6: #{simplified_transformer_forward.1} parent=1 // pred_check
      _
    $region7: #{simplified_transformer_forward.1} parent=1 // pred_check_branch
      %15 = sbr.rel (0) target = $region9
    $region8: #{simplified_transformer_forward.1} parent=1 // pred_region
      %s17 = ssub.s32 896, 896
      %18 = vsyncadd [#allocation3], %s17
      %s19 = sshll.u32 [#allocation2], 4
      %s20 = int_to_ptr.vmem [resolvable:$true] %s19
      %25 = dma.hbm_to_vmem [thread:$0]  %s1, 896, %s20, [#allocation3], 128, 128, 8
    $region9: #{simplified_transformer_forward.1} parent=1 // pred_fallthru
      _
    // Predicated region
    $region10: #{simplified_transformer_forward.1} parent=1 // pred_check
      _
    $region11: #{simplified_transformer_forward.1} parent=1 // pred_check_branch
      %27 = sbr.rel (0) target = $region13
    $region12: #{simplified_transformer_forward.1} parent=1 // pred_region
      %s29 = ssub.s32 10240, 10240
      %30 = vsyncadd [#allocation5], %s29
      %s31 = sshll.u32 [#allocation4], 4
      %s32 = int_to_ptr.vmem [resolvable:$true] %s31
      %37 = dma.hbm_to_vmem [thread:$0]  %s2, 10240, %s32, [#allocation5], 128, 128, 8
    $region13: #{simplified_transformer_forward.1} parent=1 // pred_fallthru
      _
    // Predicated region
    $region14: #{simplified_transformer_forward.1} parent=1 // pred_check
      _
    $region15: #{simplified_transformer_forward.1} parent=1 // pred_check_branch
      %39 = sbr.rel (0) target = $region17
    $region16: #{simplified_transformer_forward.1} parent=1 // pred_region
      %s41 = ssub.s32 1536, 1536
      %42 = vsyncadd [#allocation5], %s41
      %s43 = sshll.u32 [#allocation6], 4
      %s44 = int_to_ptr.vmem [resolvable:$true] %s43
      %49 = dma.hbm_to_vmem [thread:$0]  %s3, 1536, %s44, [#allocation5], 128, 128, 8
    $region17: #{simplified_transformer_forward.1} parent=1 // pred_fallthru
      _
    // Predicated region
    $region18: #{simplified_transformer_forward.1} parent=1 // pred_check
      _
    $region19: #{simplified_transformer_forward.1} parent=1 // pred_check_branch
      %51 = sbr.rel (0) target = $region21
    $region20: #{simplified_transformer_forward.1} parent=1 // pred_region
      _
    $region21: #{simplified_transformer_forward.1} parent=1 // pred_fallthru
      _
    // Predicated region
    $region22: #{simplified_transformer_forward.1} parent=1 // pred_check
      _
    $region23: #{simplified_transformer_forward.1} parent=1 // pred_check_branch
      %53 = sbr.rel (0) target = $region25
    $region24: #{simplified_transformer_forward.1} parent=1 // pred_region
      %54 = dma.done [#allocation3], 896
    $region25: #{simplified_transformer_forward.1} parent=1 // pred_fallthru
      _
    // Predicated region
    $region26: #{simplified_transformer_forward.1} parent=1 // pred_check
      _
    $region27: #{simplified_transformer_forward.1} parent=1 // pred_check_branch
      %56 = sbr.rel (0) target = $region29
    $region28: #{simplified_transformer_forward.1} parent=1 // pred_region
      %57 = dma.done [#allocation5], 10240
    $region29: #{simplified_transformer_forward.1} parent=1 // pred_fallthru
      _
    // Predicated region
    $region30: #{simplified_transformer_forward.1} parent=1 // pred_check
      _
    $region31: #{simplified_transformer_forward.1} parent=1 // pred_check_branch
      %59 = sbr.rel (0) target = $region33
    $region32: #{simplified_transformer_forward.1} parent=1 // pred_region
      %60 = dma.done [#allocation5], 1536
    $region33: #{simplified_transformer_forward.1} parent=1 // pred_fallthru
      _
    %v61 = vlaneseq
    %v62 = vand.u32 %v61, 127
    %vm63 = vcmp.lt.s32.totalorder %v62, 32
    %vm64 = vmxor %vm63, 1
    %v65 = vld [vmem:[%s0] sm:$0xff]
    %v66 = vld [vmem:[#allocation2] sm:$0xff]
    %v67 = vld [vmem:[#allocation2 + $0x8] sm:$0xff]
    %v68 = vld [vmem:[#allocation2 + $0x10] sm:$0xff]
    %v69 = vld [vmem:[#allocation2 + $0x18] sm:$0xff]
    %v70 = vld [vmem:[#allocation2 + $0x20] sm:$0xff]
    %v71 = vld [vmem:[#allocation2 + $0x28] sm:$0xff]
    %v72 = vld [vmem:[#allocation2 + $0x30] sm:$0xff]
    %v73 = vld [vmem:[%s4] sm:$0x1]
    %v74 = vlaneseq
    %v75 = vshrl.u32 %v74, 7
    %v76 = vsub.s32 0, %v75
    %v77 = vrot.slane %v73, %v76
    %vm78 = vcmask 457728
    %v80 = vsel %vm78, %v65, 0
    %82 = vmatprep.subr.mxu0 0.0
    %83 = vmatpush1.msra.mxu0 %v66
    %84 = vmatprep.subr.mxu0 0.0
    %85 = vmatpush1.msra.mxu0 %v67
    %86 = vmatprep.subr.mxu0 0.0
    %87 = vmatpush1.msra.mxu0 %v68
    %88 = vmatprep.subr.mxu0 0.0
    %89 = vmatpush1.msra.mxu0 %v69
    %90 = vmatprep.subr.mxu0 0.0
    %91 = vmatpush1.msra.mxu0 %v70
    %92 = vmatprep.subr.mxu0 0.0
    %93 = vmatpush1.msra.mxu0 %v71
    %94 = vmatprep.subr.mxu0 0.0
    %95 = vmatpush1.msra.mxu0 %v72
    %96 = vmatprep.subr.mxu0 0.0
    %97 = vmatpush1.msra.mxu0 0.0
    %98 = vmatprep.subr.mxu0 0.0
    %99 = vmatpush1.msra.mxu0 0.0
    %100 = vmatprep.subr.mxu0 0.0
    %101 = vmatpush1.msra.mxu0 0.0
    %102 = vmatprep.subr.mxu0 0.0
    %103 = vmatpush1.msra.mxu0 0.0
    %104 = vmatprep.subr.mxu0 0.0
    %105 = vmatpush1.msra.mxu0 0.0
    %106 = vmatprep.subr.mxu0 0.0
    %107 = vmatpush1.msra.mxu0 0.0
    %108 = vmatprep.subr.mxu0 0.0
    %109 = vmatpush1.msra.mxu0 0.0
    %110 = vmatprep.subr.mxu0 0.0
    %111 = vmatpush1.msra.mxu0 0.0
    %112 = vmatprep.subr.mxu0 0.0
    %113 = vmatpush1.msra.mxu0 0.0
    %114 = vmatprep.subr.mxu0 0.0
    %115 = vmatpush1.msra.mxu0 0.0
    %116 = vmatprep.subr.mxu0 0.0
    %117 = vmatpush1.msra.mxu0 0.0
    %118 = vmatprep.subr.mxu0 0.0
    %119 = vmatpush1.msra.mxu0 0.0
    %120 = vmatprep.subr.mxu0 0.0
    %121 = vmatpush1.msra.mxu0 0.0
    %122 = vmatprep.subr.mxu0 0.0
    %123 = vmatpush1.msra.mxu0 0.0
    %124 = vmatprep.subr.mxu0 0.0
    %125 = vmatpush1.msra.mxu0 0.0
    %126 = vmatprep.subr.mxu0 0.0
    %127 = vmatpush1.msra.mxu0 0.0
    %128 = vmatprep.subr.mxu0 0.0
    %129 = vmatpush1.msra.mxu0 0.0
    %130 = vmatprep.subr.mxu0 0.0
    %131 = vmatpush1.msra.mxu0 0.0
    %132 = vmatprep.subr.mxu0 0.0
    %133 = vmatpush1.msra.mxu0 0.0
    %134 = vmatprep.subr.mxu0 0.0
    %135 = vmatpush1.msra.mxu0 0.0
    %136 = vmatprep.subr.mxu0 0.0
    %137 = vmatpush1.msra.mxu0 0.0
    %138 = vmatprep.subr.mxu0 0.0
    %139 = vmatpush1.msra.mxu0 0.0
    %140 = vmatprep.subr.mxu0 0.0
    %141 = vmatpush1.msra.mxu0 0.0
    %142 = vmatprep.subr.mxu0 0.0
    %143 = vmatpush1.msra.mxu0 0.0
    %144 = vmatprep.subr.mxu0 0.0
    %145 = vmatpush1.msra.mxu0 0.0
    %146 = vmatprep.mubr.f32.mxu0 0.0
    %147 = vmatmul.mubr.f32.gmra.mrb[0].mxu0 %v80
    %v148 = vpop.f32.mrb[0].mxu0
    %v149 = vadd.f32 %v77, %v148
    %v150 = vpop.f32.mrb[0].mxu0
    %151 = vdwg.mxu0
    %v152 = vld [vmem:[%s4 + $0x1] sm:$0x1]
    %v153 = vld [vmem:[%s4 + $0x2] sm:$0x1]
    %v154 = vsel %vm63, 1, 0
    %vm155 = vcmp.eq.s32.totalorder %v154, 1
    %v156 = vsel %vm155, %v149, 0.0
    %vm157 = vcmask 523264
    %v158 = vsel %vm157, %v156, 0.0
    %159 = vadd.xlane.f32.xlu0 %v158
    %v160 = vpop.xlane.xlu0 %159
    %v161 = vsel %vm157, %v149, 0.0
    %162 = vadd.xlane.f32.xlu0 %v161
    %v163 = vpop.xlane.xlu0 %162
    %v164 = vsub.f32 %v163, %v160
    %v165 = vsel %vm155, %v160, %v164
    %v166 = vmul.f32 %v165, 0.03125
    %v167 = vsub.f32 %v149, %v166
    %v168 = vmul.f32 %v167, %v167
    %v169 = vsel %vm155, %v168, 0.0
    %v170 = vsel %vm157, %v169, 0.0
    %171 = vadd.xlane.f32.xlu0 %v170
    %v172 = vpop.xlane.xlu0 %171
    %v173 = vsel %vm157, %v168, 0.0
    %174 = vadd.xlane.f32.xlu0 %v173
    %v175 = vpop.xlane.xlu0 %174
    %v176 = vsub.f32 %v175, %v172
    %v177 = vsel %vm155, %v172, %v176
    %v178 = vmul.f32 %v177, 0.03125
    %v179 = vadd.f32 %v178, 1e-05
    %v180 = vrsqrt.pop %v179
    %v181 = vmul.f32 %v167, %v180
    %v182 = vlaneseq
    %v183 = vshrl.u32 %v182, 7
    %v184 = vsub.s32 0, %v183
    %v185 = vrot.slane %v152, %v184
    %v186 = vmul.f32 %v181, %v185
    %v187 = vlaneseq
    %v188 = vshrl.u32 %v187, 7
    %v189 = vsub.s32 0, %v188
    %v190 = vrot.slane %v153, %v189
    %v191 = vadd.f32 %v186, %v190
    %v192 = vld [vmem:[#allocation4] sm:$0xff]
    %v193 = vld [vmem:[#allocation4 + $0x8] sm:$0xff]
    %v194 = vld [vmem:[#allocation4 + $0x10] sm:$0xff]
    %v195 = vld [vmem:[#allocation4 + $0x18] sm:$0xff]
    %v196 = vld [vmem:[#allocation4 + $0x20] sm:$0xff]
    %v197 = vld [vmem:[#allocation4 + $0x28] sm:$0xff]
    %v198 = vld [vmem:[#allocation4 + $0x30] sm:$0xff]
    %v199 = vld [vmem:[#allocation4 + $0x38] sm:$0xff]
    %v200 = vld [vmem:[#allocation4 + $0x40] sm:$0xff]
    %v201 = vld [vmem:[#allocation4 + $0x48] sm:$0xff]
    %v202 = vld [vmem:[#allocation4 + $0x50] sm:$0xff]
    %v203 = vld [vmem:[#allocation4 + $0x58] sm:$0xff]
    %v204 = vld [vmem:[#allocation4 + $0x60] sm:$0xff]
    %v205 = vld [vmem:[#allocation4 + $0x68] sm:$0xff]
    %v206 = vld [vmem:[#allocation4 + $0x70] sm:$0xff]
    %v207 = vld [vmem:[#allocation4 + $0x78] sm:$0xff]
    %v208 = vld [vmem:[#allocation4 + $0x80] sm:$0xff]
    %v209 = vld [vmem:[#allocation4 + $0x88] sm:$0xff]
    %v210 = vld [vmem:[#allocation4 + $0x90] sm:$0xff]
    %v211 = vld [vmem:[#allocation4 + $0x98] sm:$0xff]
    %v212 = vld [vmem:[#allocation4 + $0xa0] sm:$0xff]
    %v213 = vld [vmem:[#allocation4 + $0xa8] sm:$0xff]
    %v214 = vld [vmem:[#allocation4 + $0xb0] sm:$0xff]
    %v215 = vld [vmem:[#allocation4 + $0xb8] sm:$0xff]
    %v216 = vld [vmem:[#allocation4 + $0xc0] sm:$0xff]
    %v217 = vld [vmem:[#allocation4 + $0xc8] sm:$0xff]
    %v218 = vld [vmem:[#allocation4 + $0xd0] sm:$0xff]
    %v219 = vld [vmem:[#allocation4 + $0xd8] sm:$0xff]
    %v220 = vld [vmem:[#allocation4 + $0xe0] sm:$0xff]
    %v221 = vld [vmem:[#allocation4 + $0xe8] sm:$0xff]
    %v222 = vld [vmem:[#allocation4 + $0xf0] sm:$0xff]
    %v223 = vld [vmem:[#allocation4 + $0xf8] sm:$0xff]
    %v224 = vld [vmem:[#allocation4 + $0x100] sm:$0xff]
    %v225 = vld [vmem:[#allocation4 + $0x108] sm:$0xff]
    %v226 = vld [vmem:[#allocation4 + $0x110] sm:$0xff]
    %v227 = vld [vmem:[#allocation4 + $0x118] sm:$0xff]
    %v228 = vld [vmem:[#allocation4 + $0x120] sm:$0xff]
    %v229 = vld [vmem:[#allocation4 + $0x128] sm:$0xff]
    %v230 = vld [vmem:[#allocation4 + $0x130] sm:$0xff]
    %v231 = vld [vmem:[#allocation4 + $0x138] sm:$0xff]
    %v233 = vsel %vm157, %v191, 0
    %235 = vmatprep.subr.mxu0 0.0
    %236 = vmatpush1.msra.mxu0 %v192
    %237 = vmatprep.subr.mxu0 0.0
    %238 = vmatpush1.msra.mxu0 %v193
    %239 = vmatprep.subr.mxu0 0.0
    %240 = vmatpush1.msra.mxu0 %v194
    %241 = vmatprep.subr.mxu0 0.0
    %242 = vmatpush1.msra.mxu0 %v195
    %243 = vmatprep.subr.mxu0 0.0
    %244 = vmatpush1.msra.mxu0 %v196
    %245 = vmatprep.subr.mxu0 0.0
    %246 = vmatpush1.msra.mxu0 %v197
    %247 = vmatprep.subr.mxu0 0.0
    %248 = vmatpush1.msra.mxu0 %v198
    %249 = vmatprep.subr.mxu0 0.0
    %250 = vmatpush1.msra.mxu0 %v199
    %251 = vmatprep.subr.mxu0 0.0
    %252 = vmatpush1.msra.mxu0 0.0
    %253 = vmatprep.subr.mxu0 0.0
    %254 = vmatpush1.msra.mxu0 0.0
    %255 = vmatprep.subr.mxu0 0.0
    %256 = vmatpush1.msra.mxu0 0.0
    %257 = vmatprep.subr.mxu0 0.0
    %258 = vmatpush1.msra.mxu0 0.0
    %259 = vmatprep.subr.mxu0 0.0
    %260 = vmatpush1.msra.mxu0 0.0
    %261 = vmatprep.subr.mxu0 0.0
    %262 = vmatpush1.msra.mxu0 0.0
    %263 = vmatprep.subr.mxu0 0.0
    %264 = vmatpush1.msra.mxu0 0.0
    %265 = vmatprep.subr.mxu0 0.0
    %266 = vmatpush1.msra.mxu0 0.0
    %267 = vmatprep.subr.mxu0 0.0
    %268 = vmatpush1.msra.mxu0 0.0
    %269 = vmatprep.subr.mxu0 0.0
    %270 = vmatpush1.msra.mxu0 0.0
    %271 = vmatprep.subr.mxu0 0.0
    %272 = vmatpush1.msra.mxu0 0.0
    %273 = vmatprep.subr.mxu0 0.0
    %274 = vmatpush1.msra.mxu0 0.0
    %275 = vmatprep.subr.mxu0 0.0
    %276 = vmatpush1.msra.mxu0 0.0
    %277 = vmatprep.subr.mxu0 0.0
    %278 = vmatpush1.msra.mxu0 0.0
    %279 = vmatprep.subr.mxu0 0.0
    %280 = vmatpush1.msra.mxu0 0.0
    %281 = vmatprep.subr.mxu0 0.0
    %282 = vmatpush1.msra.mxu0 0.0
    %283 = vmatprep.subr.mxu0 0.0
    %284 = vmatpush1.msra.mxu0 0.0
    %285 = vmatprep.subr.mxu0 0.0
    %286 = vmatpush1.msra.mxu0 0.0
    %287 = vmatprep.subr.mxu0 0.0
    %288 = vmatpush1.msra.mxu0 0.0
    %289 = vmatprep.subr.mxu0 0.0
    %290 = vmatpush1.msra.mxu0 0.0
    %291 = vmatprep.subr.mxu0 0.0
    %292 = vmatpush1.msra.mxu0 0.0
    %293 = vmatprep.subr.mxu0 0.0
    %294 = vmatpush1.msra.mxu0 0.0
    %295 = vmatprep.subr.mxu0 0.0
    %296 = vmatpush1.msra.mxu0 0.0
    %297 = vmatprep.subr.mxu0 0.0
    %298 = vmatpush1.msra.mxu0 0.0
    %299 = vmatprep.mubr.f32.mxu0 0.0
    %300 = vmatmul.mubr.f32.gmra.mrb[0].mxu0 %v233
    %v301 = vpop.f32.mrb[0].mxu0
    %v302 = vadd.f32 0.0, %v301
    %v303 = vpop.f32.mrb[0].mxu0
    %304 = vdwg.mxu0
    %v305 = vadd.f32 %v191, %v302
    %v306 = vld [vmem:[%s4 + $0x3] sm:$0x1]
    %v307 = vlaneseq
    %v308 = vshrl.u32 %v307, 7
    %v309 = vsub.s32 0, %v308
    %v310 = vrot.slane %v306, %v309
    %v311 = vadd.f32 %v305, %v310
    %v312 = vld [vmem:[%s4 + $0x4] sm:$0x1]
    %v313 = vld [vmem:[%s4 + $0x5] sm:$0x1]
    %v314 = vsel %vm155, %v311, 0.0
    %v315 = vsel %vm157, %v314, 0.0
    %316 = vadd.xlane.f32.xlu0 %v315
    %v317 = vpop.xlane.xlu0 %316
    %v318 = vmul.f32 %v317, 0.03125
    %v319 = vsub.f32 %v311, %v318
    %v320 = vmul.f32 %v319, %v319
    %v321 = vsel %vm155, %v320, 0.0
    %v322 = vsel %vm157, %v321, 0.0
    %323 = vadd.xlane.f32.xlu0 %v322
    %v324 = vpop.xlane.xlu0 %323
    %v325 = vmul.f32 %v324, 0.03125
    %v326 = vadd.f32 %v325, 1e-05
    %v327 = vrsqrt.pop %v326
    %v328 = vmul.f32 %v319, %v327
    %v329 = vlaneseq
    %v330 = vshrl.u32 %v329, 7
    %v331 = vsub.s32 0, %v330
    %v332 = vrot.slane %v312, %v331
    %v333 = vmul.f32 %v328, %v332
    %v334 = vlaneseq
    %v335 = vshrl.u32 %v334, 7
    %v336 = vsub.s32 0, %v335
    %v337 = vrot.slane %v313, %v336
    %v338 = vadd.f32 %v333, %v337
    %v339 = vsel %vm155, %v338, %v311
    %v341 = vsel %vm157, %v339, 0
    %343 = vmatprep.subr.mxu0 0.0
    %344 = vmatpush1.msra.mxu0 %v200
    %345 = vmatprep.subr.mxu0 0.0
    %346 = vmatpush1.msra.mxu0 %v201
    %347 = vmatprep.subr.mxu0 0.0
    %348 = vmatpush1.msra.mxu0 %v202
    %349 = vmatprep.subr.mxu0 0.0
    %350 = vmatpush1.msra.mxu0 %v203
    %351 = vmatprep.subr.mxu0 0.0
    %352 = vmatpush1.msra.mxu0 %v204
    %353 = vmatprep.subr.mxu0 0.0
    %354 = vmatpush1.msra.mxu0 %v205
    %355 = vmatprep.subr.mxu0 0.0
    %356 = vmatpush1.msra.mxu0 %v206
    %357 = vmatprep.subr.mxu0 0.0
    %358 = vmatpush1.msra.mxu0 %v207
    %359 = vmatprep.subr.mxu0 0.0
    %360 = vmatpush1.msra.mxu0 0.0
    %361 = vmatprep.subr.mxu0 0.0
    %362 = vmatpush1.msra.mxu0 0.0
    %363 = vmatprep.subr.mxu0 0.0
    %364 = vmatpush1.msra.mxu0 0.0
    %365 = vmatprep.subr.mxu0 0.0
    %366 = vmatpush1.msra.mxu0 0.0
    %367 = vmatprep.subr.mxu0 0.0
    %368 = vmatpush1.msra.mxu0 0.0
    %369 = vmatprep.subr.mxu0 0.0
    %370 = vmatpush1.msra.mxu0 0.0
    %371 = vmatprep.subr.mxu0 0.0
    %372 = vmatpush1.msra.mxu0 0.0
    %373 = vmatprep.subr.mxu0 0.0
    %374 = vmatpush1.msra.mxu0 0.0
    %375 = vmatprep.subr.mxu0 0.0
    %376 = vmatpush1.msra.mxu0 0.0
    %377 = vmatprep.subr.mxu0 0.0
    %378 = vmatpush1.msra.mxu0 0.0
    %379 = vmatprep.subr.mxu0 0.0
    %380 = vmatpush1.msra.mxu0 0.0
    %381 = vmatprep.subr.mxu0 0.0
    %382 = vmatpush1.msra.mxu0 0.0
    %383 = vmatprep.subr.mxu0 0.0
    %384 = vmatpush1.msra.mxu0 0.0
    %385 = vmatprep.subr.mxu0 0.0
    %386 = vmatpush1.msra.mxu0 0.0
    %387 = vmatprep.subr.mxu0 0.0
    %388 = vmatpush1.msra.mxu0 0.0
    %389 = vmatprep.subr.mxu0 0.0
    %390 = vmatpush1.msra.mxu0 0.0
    %391 = vmatprep.subr.mxu0 0.0
    %392 = vmatpush1.msra.mxu0 0.0
    %393 = vmatprep.subr.mxu0 0.0
    %394 = vmatpush1.msra.mxu0 0.0
    %395 = vmatprep.subr.mxu0 0.0
    %396 = vmatpush1.msra.mxu0 0.0
    %397 = vmatprep.subr.mxu0 0.0
    %398 = vmatpush1.msra.mxu0 0.0
    %399 = vmatprep.subr.mxu0 0.0
    %400 = vmatpush1.msra.mxu0 0.0
    %401 = vmatprep.subr.mxu0 0.0
    %402 = vmatpush1.msra.mxu0 0.0
    %403 = vmatprep.subr.mxu0 0.0
    %404 = vmatpush1.msra.mxu0 0.0
    %405 = vmatprep.subr.mxu0 0.0
    %406 = vmatpush1.msra.mxu0 0.0
    %407 = vmatprep.mubr.f32.mxu0 0.0
    %408 = vmatmul.mubr.f32.gmra.mrb[0].mxu0 %v341
    %v409 = vpop.f32.mrb[0].mxu0
    %v410 = vadd.f32 0.0, %v409
    %v411 = vpop.f32.mrb[0].mxu0
    %412 = vdwg.mxu0
    %v413 = vadd.f32 %v339, %v410
    %v414 = vld [vmem:[%s4 + $0x6] sm:$0x1]
    %v415 = vlaneseq
    %v416 = vshrl.u32 %v415, 7
    %v417 = vsub.s32 0, %v416
    %v418 = vrot.slane %v414, %v417
    %v419 = vadd.f32 %v413, %v418
    %v420 = vld [vmem:[%s4 + $0x7] sm:$0x1]
    %v421 = vld [vmem:[%s4 + $0x8] sm:$0x1]
    %v422 = vsel %vm64, 1, 0
    %vm423 = vcmp.eq.s32.totalorder %v422, 1
    %v424 = vsel %vm423, %v419, 0.0
    %v425 = vsel %vm157, %v424, 0.0
    %426 = vadd.xlane.f32.xlu0 %v425
    %v427 = vpop.xlane.xlu0 %426
    %v428 = vmul.f32 %v427, 0.03125
    %v429 = vsub.f32 %v419, %v428
    %v430 = vmul.f32 %v429, %v429
    %v431 = vsel %vm423, %v430, 0.0
    %v432 = vsel %vm157, %v431, 0.0
    %433 = vadd.xlane.f32.xlu0 %v432
    %v434 = vpop.xlane.xlu0 %433
    %v435 = vmul.f32 %v434, 0.03125
    %v436 = vadd.f32 %v435, 1e-05
    %v437 = vrsqrt.pop %v436
    %v438 = vmul.f32 %v429, %v437
    %v439 = vlaneseq
    %v440 = vshrl.u32 %v439, 7
    %v441 = vsub.s32 0, %v440
    %v442 = vrot.slane %v420, %v441
    %v443 = vmul.f32 %v438, %v442
    %v444 = vlaneseq
    %v445 = vshrl.u32 %v444, 7
    %v446 = vsub.s32 0, %v445
    %v447 = vrot.slane %v421, %v446
    %v448 = vadd.f32 %v443, %v447
    %v449 = vsel %vm423, %v448, %v419
    %v450 = vld [vmem:[%s4 + $0x9] sm:$0x1]
    %v451 = vlaneseq
    %v452 = vshrl.u32 %v451, 7
    %v453 = vsub.s32 0, %v452
    %v454 = vrot.slane %v450, %v453
    %v456 = vsel %vm157, %v449, 0
    %458 = vmatprep.subr.mxu0 0.0
    %459 = vmatpush1.msra.mxu0 %v208
    %460 = vmatprep.subr.mxu0 0.0
    %461 = vmatpush1.msra.mxu0 %v209
    %462 = vmatprep.subr.mxu0 0.0
    %463 = vmatpush1.msra.mxu0 %v210
    %464 = vmatprep.subr.mxu0 0.0
    %465 = vmatpush1.msra.mxu0 %v211
    %466 = vmatprep.subr.mxu0 0.0
    %467 = vmatpush1.msra.mxu0 %v212
    %468 = vmatprep.subr.mxu0 0.0
    %469 = vmatpush1.msra.mxu0 %v213
    %470 = vmatprep.subr.mxu0 0.0
    %471 = vmatpush1.msra.mxu0 %v214
    %472 = vmatprep.subr.mxu0 0.0
    %473 = vmatpush1.msra.mxu0 %v215
    %474 = vmatprep.subr.mxu0 0.0
    %475 = vmatpush1.msra.mxu0 0.0
    %476 = vmatprep.subr.mxu0 0.0
    %477 = vmatpush1.msra.mxu0 0.0
    %478 = vmatprep.subr.mxu0 0.0
    %479 = vmatpush1.msra.mxu0 0.0
    %480 = vmatprep.subr.mxu0 0.0
    %481 = vmatpush1.msra.mxu0 0.0
    %482 = vmatprep.subr.mxu0 0.0
    %483 = vmatpush1.msra.mxu0 0.0
    %484 = vmatprep.subr.mxu0 0.0
    %485 = vmatpush1.msra.mxu0 0.0
    %486 = vmatprep.subr.mxu0 0.0
    %487 = vmatpush1.msra.mxu0 0.0
    %488 = vmatprep.subr.mxu0 0.0
    %489 = vmatpush1.msra.mxu0 0.0
    %490 = vmatprep.subr.mxu0 0.0
    %491 = vmatpush1.msra.mxu0 0.0
    %492 = vmatprep.subr.mxu0 0.0
    %493 = vmatpush1.msra.mxu0 0.0
    %494 = vmatprep.subr.mxu0 0.0
    %495 = vmatpush1.msra.mxu0 0.0
    %496 = vmatprep.subr.mxu0 0.0
    %497 = vmatpush1.msra.mxu0 0.0
    %498 = vmatprep.subr.mxu0 0.0
    %499 = vmatpush1.msra.mxu0 0.0
    %500 = vmatprep.subr.mxu0 0.0
    %501 = vmatpush1.msra.mxu0 0.0
    %502 = vmatprep.subr.mxu0 0.0
    %503 = vmatpush1.msra.mxu0 0.0
    %504 = vmatprep.subr.mxu0 0.0
    %505 = vmatpush1.msra.mxu0 0.0
    %506 = vmatprep.subr.mxu0 0.0
    %507 = vmatpush1.msra.mxu0 0.0
    %508 = vmatprep.subr.mxu0 0.0
    %509 = vmatpush1.msra.mxu0 0.0
    %510 = vmatprep.subr.mxu0 0.0
    %511 = vmatpush1.msra.mxu0 0.0
    %512 = vmatprep.subr.mxu0 0.0
    %513 = vmatpush1.msra.mxu0 0.0
    %514 = vmatprep.subr.mxu0 0.0
    %515 = vmatpush1.msra.mxu0 0.0
    %516 = vmatprep.subr.mxu0 0.0
    %517 = vmatpush1.msra.mxu0 0.0
    %518 = vmatprep.subr.mxu0 0.0
    %519 = vmatpush1.msra.mxu0 0.0
    %520 = vmatprep.subr.mxu0 0.0
    %521 = vmatpush1.msra.mxu0 0.0
    %522 = vmatprep.mubr.f32.mxu0 0.0
    %523 = vmatmul.mubr.f32.gmra.mrb[0].mxu0 %v456
    %v524 = vpop.f32.mrb[0].mxu0
    %v525 = vadd.f32 %v454, %v524
    %v526 = vpop.f32.mrb[0].mxu0
    %527 = vdwg.mxu0
    %v528 = vmax.f32 %v525, 0.0
    %529 = vmatprep.subr.mxu0 0.0
    %530 = vmatpush1.msra.mxu0 %v216
    %531 = vmatprep.subr.mxu0 0.0
    %532 = vmatpush1.msra.mxu0 %v217
    %533 = vmatprep.subr.mxu0 0.0
    %534 = vmatpush1.msra.mxu0 %v218
    %535 = vmatprep.subr.mxu0 0.0
    %536 = vmatpush1.msra.mxu0 %v219
    %537 = vmatprep.subr.mxu0 0.0
    %538 = vmatpush1.msra.mxu0 %v220
    %539 = vmatprep.subr.mxu0 0.0
    %540 = vmatpush1.msra.mxu0 %v221
    %541 = vmatprep.subr.mxu0 0.0
    %542 = vmatpush1.msra.mxu0 %v222
    %543 = vmatprep.subr.mxu0 0.0
    %544 = vmatpush1.msra.mxu0 %v223
    %545 = vmatprep.subr.mxu0 0.0
    %546 = vmatpush1.msra.mxu0 %v224
    %547 = vmatprep.subr.mxu0 0.0
    %548 = vmatpush1.msra.mxu0 %v225
    %549 = vmatprep.subr.mxu0 0.0
    %550 = vmatpush1.msra.mxu0 %v226
    %551 = vmatprep.subr.mxu0 0.0
    %552 = vmatpush1.msra.mxu0 %v227
    %553 = vmatprep.subr.mxu0 0.0
    %554 = vmatpush1.msra.mxu0 %v228
    %555 = vmatprep.subr.mxu0 0.0
    %556 = vmatpush1.msra.mxu0 %v229
    %557 = vmatprep.subr.mxu0 0.0
    %558 = vmatpush1.msra.mxu0 %v230
    %559 = vmatprep.subr.mxu0 0.0
    %560 = vmatpush1.msra.mxu0 %v231
    %561 = vmatprep.subr.mxu0 0.0
    %562 = vmatpush1.msra.mxu0 0.0
    %563 = vmatprep.subr.mxu0 0.0
    %564 = vmatpush1.msra.mxu0 0.0
    %565 = vmatprep.subr.mxu0 0.0
    %566 = vmatpush1.msra.mxu0 0.0
    %567 = vmatprep.subr.mxu0 0.0
    %568 = vmatpush1.msra.mxu0 0.0
    %569 = vmatprep.subr.mxu0 0.0
    %570 = vmatpush1.msra.mxu0 0.0
    %571 = vmatprep.subr.mxu0 0.0
    %572 = vmatpush1.msra.mxu0 0.0
    %573 = vmatprep.subr.mxu0 0.0
    %574 = vmatpush1.msra.mxu0 0.0
    %575 = vmatprep.subr.mxu0 0.0
    %576 = vmatpush1.msra.mxu0 0.0
    %577 = vmatprep.subr.mxu0 0.0
    %578 = vmatpush1.msra.mxu0 0.0
    %579 = vmatprep.subr.mxu0 0.0
    %580 = vmatpush1.msra.mxu0 0.0
    %581 = vmatprep.subr.mxu0 0.0
    %582 = vmatpush1.msra.mxu0 0.0
    %583 = vmatprep.subr.mxu0 0.0
    %584 = vmatpush1.msra.mxu0 0.0
    %585 = vmatprep.subr.mxu0 0.0
    %586 = vmatpush1.msra.mxu0 0.0
    %587 = vmatprep.subr.mxu0 0.0
    %588 = vmatpush1.msra.mxu0 0.0
    %589 = vmatprep.subr.mxu0 0.0
    %590 = vmatpush1.msra.mxu0 0.0
    %591 = vmatprep.subr.mxu0 0.0
    %592 = vmatpush1.msra.mxu0 0.0
    %593 = vmatprep.mubr.f32.mxu0 0.0
    %594 = vmatmul.mubr.f32.gmra.mrb[0].mxu0 %v528
    %v595 = vpop.f32.mrb[0].mxu0
    %v596 = vadd.f32 0.0, %v595
    %v597 = vpop.f32.mrb[0].mxu0
    %598 = vdwg.mxu0
    %v599 = vadd.f32 %v449, %v596
    %v600 = vld [vmem:[%s4 + $0xa] sm:$0x1]
    %v601 = vlaneseq
    %v602 = vshrl.u32 %v601, 7
    %v603 = vsub.s32 0, %v602
    %v604 = vrot.slane %v600, %v603
    %v605 = vadd.f32 %v599, %v604
    %v606 = vld [vmem:[%s4 + $0xb] sm:$0x1]
    %v607 = vld [vmem:[%s4 + $0xc] sm:$0x1]
    %v608 = vsel %vm155, %v605, 0.0
    %v609 = vsel %vm157, %v608, 0.0
    %610 = vadd.xlane.f32.xlu0 %v609
    %v611 = vpop.xlane.xlu0 %610
    %v612 = vsel %vm157, %v605, 0.0
    %613 = vadd.xlane.f32.xlu0 %v612
    %v614 = vpop.xlane.xlu0 %613
    %v615 = vsub.f32 %v614, %v611
    %v616 = vsel %vm155, %v611, %v615
    %v617 = vmul.f32 %v616, 0.03125
    %v618 = vsub.f32 %v605, %v617
    %v619 = vmul.f32 %v618, %v618
    %v620 = vsel %vm155, %v619, 0.0
    %v621 = vsel %vm157, %v620, 0.0
    %622 = vadd.xlane.f32.xlu0 %v621
    %v623 = vpop.xlane.xlu0 %622
    %v624 = vsel %vm157, %v619, 0.0
    %625 = vadd.xlane.f32.xlu0 %v624
    %v626 = vpop.xlane.xlu0 %625
    %v627 = vsub.f32 %v626, %v623
    %v628 = vsel %vm155, %v623, %v627
    %v629 = vmul.f32 %v628, 0.03125
    %v630 = vadd.f32 %v629, 1e-05
    %v631 = vrsqrt.pop %v630
    %v632 = vmul.f32 %v618, %v631
    %v633 = vlaneseq
    %v634 = vshrl.u32 %v633, 7
    %v635 = vsub.s32 0, %v634
    %v636 = vrot.slane %v606, %v635
    %v637 = vmul.f32 %v632, %v636
    %v638 = vlaneseq
    %v639 = vshrl.u32 %v638, 7
    %v640 = vsub.s32 0, %v639
    %v641 = vrot.slane %v607, %v640
    %v642 = vadd.f32 %v637, %v641
    %v643 = vld [vmem:[#allocation4 + $0x140] sm:$0xff]
    %v644 = vld [vmem:[#allocation4 + $0x148] sm:$0xff]
    %v645 = vld [vmem:[#allocation4 + $0x150] sm:$0xff]
    %v646 = vld [vmem:[#allocation4 + $0x158] sm:$0xff]
    %v647 = vld [vmem:[#allocation4 + $0x160] sm:$0xff]
    %v648 = vld [vmem:[#allocation4 + $0x168] sm:$0xff]
    %v649 = vld [vmem:[#allocation4 + $0x170] sm:$0xff]
    %v650 = vld [vmem:[#allocation4 + $0x178] sm:$0xff]
    %v651 = vld [vmem:[#allocation4 + $0x180] sm:$0xff]
    %v652 = vld [vmem:[#allocation4 + $0x188] sm:$0xff]
    %v653 = vld [vmem:[#allocation4 + $0x190] sm:$0xff]
    %v654 = vld [vmem:[#allocation4 + $0x198] sm:$0xff]
    %v655 = vld [vmem:[#allocation4 + $0x1a0] sm:$0xff]
    %v656 = vld [vmem:[#allocation4 + $0x1a8] sm:$0xff]
    %v657 = vld [vmem:[#allocation4 + $0x1b0] sm:$0xff]
    %v658 = vld [vmem:[#allocation4 + $0x1b8] sm:$0xff]
    %v659 = vld [vmem:[#allocation4 + $0x1c0] sm:$0xff]
    %v660 = vld [vmem:[#allocation4 + $0x1c8] sm:$0xff]
    %v661 = vld [vmem:[#allocation4 + $0x1d0] sm:$0xff]
    %v662 = vld [vmem:[#allocation4 + $0x1d8] sm:$0xff]
    %v663 = vld [vmem:[#allocation4 + $0x1e0] sm:$0xff]
    %v664 = vld [vmem:[#allocation4 + $0x1e8] sm:$0xff]
    %v665 = vld [vmem:[#allocation4 + $0x1f0] sm:$0xff]
    %v666 = vld [vmem:[#allocation4 + $0x1f8] sm:$0xff]
    %v667 = vld [vmem:[#allocation4 + $0x200] sm:$0xff]
    %v668 = vld [vmem:[#allocation4 + $0x208] sm:$0xff]
    %v669 = vld [vmem:[#allocation4 + $0x210] sm:$0xff]
    %v670 = vld [vmem:[#allocation4 + $0x218] sm:$0xff]
    %v671 = vld [vmem:[#allocation4 + $0x220] sm:$0xff]
    %v672 = vld [vmem:[#allocation4 + $0x228] sm:$0xff]
    %v673 = vld [vmem:[#allocation4 + $0x230] sm:$0xff]
    %v674 = vld [vmem:[#allocation4 + $0x238] sm:$0xff]
    %v675 = vld [vmem:[#allocation4 + $0x240] sm:$0xff]
    %v676 = vld [vmem:[#allocation4 + $0x248] sm:$0xff]
    %v677 = vld [vmem:[#allocation4 + $0x250] sm:$0xff]
    %v678 = vld [vmem:[#allocation4 + $0x258] sm:$0xff]
    %v679 = vld [vmem:[#allocation4 + $0x260] sm:$0xff]
    %v680 = vld [vmem:[#allocation4 + $0x268] sm:$0xff]
    %v681 = vld [vmem:[#allocation4 + $0x270] sm:$0xff]
    %v682 = vld [vmem:[#allocation4 + $0x278] sm:$0xff]
    %v684 = vsel %vm157, %v642, 0
    %686 = vmatprep.subr.mxu0 0.0
    %687 = vmatpush1.msra.mxu0 %v643
    %688 = vmatprep.subr.mxu0 0.0
    %689 = vmatpush1.msra.mxu0 %v644
    %690 = vmatprep.subr.mxu0 0.0
    %691 = vmatpush1.msra.mxu0 %v645
    %692 = vmatprep.subr.mxu0 0.0
    %693 = vmatpush1.msra.mxu0 %v646
    %694 = vmatprep.subr.mxu0 0.0
    %695 = vmatpush1.msra.mxu0 %v647
    %696 = vmatprep.subr.mxu0 0.0
    %697 = vmatpush1.msra.mxu0 %v648
    %698 = vmatprep.subr.mxu0 0.0
    %699 = vmatpush1.msra.mxu0 %v649
    %700 = vmatprep.subr.mxu0 0.0
    %701 = vmatpush1.msra.mxu0 %v650
    %702 = vmatprep.subr.mxu0 0.0
    %703 = vmatpush1.msra.mxu0 0.0
    %704 = vmatprep.subr.mxu0 0.0
    %705 = vmatpush1.msra.mxu0 0.0
    %706 = vmatprep.subr.mxu0 0.0
    %707 = vmatpush1.msra.mxu0 0.0
    %708 = vmatprep.subr.mxu0 0.0
    %709 = vmatpush1.msra.mxu0 0.0
    %710 = vmatprep.subr.mxu0 0.0
    %711 = vmatpush1.msra.mxu0 0.0
    %712 = vmatprep.subr.mxu0 0.0
    %713 = vmatpush1.msra.mxu0 0.0
    %714 = vmatprep.subr.mxu0 0.0
    %715 = vmatpush1.msra.mxu0 0.0
    %716 = vmatprep.subr.mxu0 0.0
    %717 = vmatpush1.msra.mxu0 0.0
    %718 = vmatprep.subr.mxu0 0.0
    %719 = vmatpush1.msra.mxu0 0.0
    %720 = vmatprep.subr.mxu0 0.0
    %721 = vmatpush1.msra.mxu0 0.0
    %722 = vmatprep.subr.mxu0 0.0
    %723 = vmatpush1.msra.mxu0 0.0
    %724 = vmatprep.subr.mxu0 0.0
    %725 = vmatpush1.msra.mxu0 0.0
    %726 = vmatprep.subr.mxu0 0.0
    %727 = vmatpush1.msra.mxu0 0.0
    %728 = vmatprep.subr.mxu0 0.0
    %729 = vmatpush1.msra.mxu0 0.0
    %730 = vmatprep.subr.mxu0 0.0
    %731 = vmatpush1.msra.mxu0 0.0
    %732 = vmatprep.subr.mxu0 0.0
    %733 = vmatpush1.msra.mxu0 0.0
    %734 = vmatprep.subr.mxu0 0.0
    %735 = vmatpush1.msra.mxu0 0.0
    %736 = vmatprep.subr.mxu0 0.0
    %737 = vmatpush1.msra.mxu0 0.0
    %738 = vmatprep.subr.mxu0 0.0
    %739 = vmatpush1.msra.mxu0 0.0
    %740 = vmatprep.subr.mxu0 0.0
    %741 = vmatpush1.msra.mxu0 0.0
    %742 = vmatprep.subr.mxu0 0.0
    %743 = vmatpush1.msra.mxu0 0.0
    %744 = vmatprep.subr.mxu0 0.0
    %745 = vmatpush1.msra.mxu0 0.0
    %746 = vmatprep.subr.mxu0 0.0
    %747 = vmatpush1.msra.mxu0 0.0
    %748 = vmatprep.subr.mxu0 0.0
    %749 = vmatpush1.msra.mxu0 0.0
    %750 = vmatprep.mubr.f32.mxu0 0.0
    %751 = vmatmul.mubr.f32.gmra.mrb[0].mxu0 %v684
    %v752 = vpop.f32.mrb[0].mxu0
    %v753 = vadd.f32 0.0, %v752
    %v754 = vpop.f32.mrb[0].mxu0
    %755 = vdwg.mxu0
    %v756 = vadd.f32 %v642, %v753
    %v757 = vld [vmem:[%s4 + $0xd] sm:$0x1]
    %v758 = vlaneseq
    %v759 = vshrl.u32 %v758, 7
    %v760 = vsub.s32 0, %v759
    %v761 = vrot.slane %v757, %v760
    %v762 = vadd.f32 %v756, %v761
    %v763 = vld [vmem:[%s4 + $0xe] sm:$0x1]
    %v764 = vld [vmem:[%s4 + $0xf] sm:$0x1]
    %v765 = vsel %vm155, %v762, 0.0
    %v766 = vsel %vm157, %v765, 0.0
    %767 = vadd.xlane.f32.xlu0 %v766
    %v768 = vpop.xlane.xlu0 %767
    %v769 = vmul.f32 %v768, 0.03125
    %v770 = vsub.f32 %v762, %v769
    %v771 = vmul.f32 %v770, %v770
    %v772 = vsel %vm155, %v771, 0.0
    %v773 = vsel %vm157, %v772, 0.0
    %774 = vadd.xlane.f32.xlu0 %v773
    %v775 = vpop.xlane.xlu0 %774
    %v776 = vmul.f32 %v775, 0.03125
    %v777 = vadd.f32 %v776, 1e-05
    %v778 = vrsqrt.pop %v777
    %v779 = vmul.f32 %v770, %v778
    %v780 = vlaneseq
    %v781 = vshrl.u32 %v780, 7
    %v782 = vsub.s32 0, %v781
    %v783 = vrot.slane %v763, %v782
    %v784 = vmul.f32 %v779, %v783
    %v785 = vlaneseq
    %v786 = vshrl.u32 %v785, 7
    %v787 = vsub.s32 0, %v786
    %v788 = vrot.slane %v764, %v787
    %v789 = vadd.f32 %v784, %v788
    %v790 = vsel %vm155, %v789, %v762
    %v792 = vsel %vm157, %v790, 0
    %794 = vmatprep.subr.mxu0 0.0
    %795 = vmatpush1.msra.mxu0 %v651
    %796 = vmatprep.subr.mxu0 0.0
    %797 = vmatpush1.msra.mxu0 %v652
    %798 = vmatprep.subr.mxu0 0.0
    %799 = vmatpush1.msra.mxu0 %v653
    %800 = vmatprep.subr.mxu0 0.0
    %801 = vmatpush1.msra.mxu0 %v654
    %802 = vmatprep.subr.mxu0 0.0
    %803 = vmatpush1.msra.mxu0 %v655
    %804 = vmatprep.subr.mxu0 0.0
    %805 = vmatpush1.msra.mxu0 %v656
    %806 = vmatprep.subr.mxu0 0.0
    %807 = vmatpush1.msra.mxu0 %v657
    %808 = vmatprep.subr.mxu0 0.0
    %809 = vmatpush1.msra.mxu0 %v658
    %810 = vmatprep.subr.mxu0 0.0
    %811 = vmatpush1.msra.mxu0 0.0
    %812 = vmatprep.subr.mxu0 0.0
    %813 = vmatpush1.msra.mxu0 0.0
    %814 = vmatprep.subr.mxu0 0.0
    %815 = vmatpush1.msra.mxu0 0.0
    %816 = vmatprep.subr.mxu0 0.0
    %817 = vmatpush1.msra.mxu0 0.0
    %818 = vmatprep.subr.mxu0 0.0
    %819 = vmatpush1.msra.mxu0 0.0
    %820 = vmatprep.subr.mxu0 0.0
    %821 = vmatpush1.msra.mxu0 0.0
    %822 = vmatprep.subr.mxu0 0.0
    %823 = vmatpush1.msra.mxu0 0.0
    %824 = vmatprep.subr.mxu0 0.0
    %825 = vmatpush1.msra.mxu0 0.0
    %826 = vmatprep.subr.mxu0 0.0
    %827 = vmatpush1.msra.mxu0 0.0
    %828 = vmatprep.subr.mxu0 0.0
    %829 = vmatpush1.msra.mxu0 0.0
    %830 = vmatprep.subr.mxu0 0.0
    %831 = vmatpush1.msra.mxu0 0.0
    %832 = vmatprep.subr.mxu0 0.0
    %833 = vmatpush1.msra.mxu0 0.0
    %834 = vmatprep.subr.mxu0 0.0
    %835 = vmatpush1.msra.mxu0 0.0
    %836 = vmatprep.subr.mxu0 0.0
    %837 = vmatpush1.msra.mxu0 0.0
    %838 = vmatprep.subr.mxu0 0.0
    %839 = vmatpush1.msra.mxu0 0.0
    %840 = vmatprep.subr.mxu0 0.0
    %841 = vmatpush1.msra.mxu0 0.0
    %842 = vmatprep.subr.mxu0 0.0
    %843 = vmatpush1.msra.mxu0 0.0
    %844 = vmatprep.subr.mxu0 0.0
    %845 = vmatpush1.msra.mxu0 0.0
    %846 = vmatprep.subr.mxu0 0.0
    %847 = vmatpush1.msra.mxu0 0.0
    %848 = vmatprep.subr.mxu0 0.0
    %849 = vmatpush1.msra.mxu0 0.0
    %850 = vmatprep.subr.mxu0 0.0
    %851 = vmatpush1.msra.mxu0 0.0
    %852 = vmatprep.subr.mxu0 0.0
    %853 = vmatpush1.msra.mxu0 0.0
    %854 = vmatprep.subr.mxu0 0.0
    %855 = vmatpush1.msra.mxu0 0.0
    %856 = vmatprep.subr.mxu0 0.0
    %857 = vmatpush1.msra.mxu0 0.0
    %858 = vmatprep.mubr.f32.mxu0 0.0
    %859 = vmatmul.mubr.f32.gmra.mrb[0].mxu0 %v792
    %v860 = vpop.f32.mrb[0].mxu0
    %v861 = vadd.f32 0.0, %v860
    %v862 = vpop.f32.mrb[0].mxu0
    %863 = vdwg.mxu0
    %v864 = vadd.f32 %v790, %v861
    %v865 = vld [vmem:[%s4 + $0x10] sm:$0x1]
    %v866 = vlaneseq
    %v867 = vshrl.u32 %v866, 7
    %v868 = vsub.s32 0, %v867
    %v869 = vrot.slane %v865, %v868
    %v870 = vadd.f32 %v864, %v869
    %v871 = vld [vmem:[%s4 + $0x11] sm:$0x1]
    %v872 = vld [vmem:[%s4 + $0x12] sm:$0x1]
    %v873 = vsel %vm423, %v870, 0.0
    %v874 = vsel %vm157, %v873, 0.0
    %875 = vadd.xlane.f32.xlu0 %v874
    %v876 = vpop.xlane.xlu0 %875
    %v877 = vmul.f32 %v876, 0.03125
    %v878 = vsub.f32 %v870, %v877
    %v879 = vmul.f32 %v878, %v878
    %v880 = vsel %vm423, %v879, 0.0
    %v881 = vsel %vm157, %v880, 0.0
    %882 = vadd.xlane.f32.xlu0 %v881
    %v883 = vpop.xlane.xlu0 %882
    %v884 = vmul.f32 %v883, 0.03125
    %v885 = vadd.f32 %v884, 1e-05
    %v886 = vrsqrt.pop %v885
    %v887 = vmul.f32 %v878, %v886
    %v888 = vlaneseq
    %v889 = vshrl.u32 %v888, 7
    %v890 = vsub.s32 0, %v889
    %v891 = vrot.slane %v871, %v890
    %v892 = vmul.f32 %v887, %v891
    %v893 = vlaneseq
    %v894 = vshrl.u32 %v893, 7
    %v895 = vsub.s32 0, %v894
    %v896 = vrot.slane %v872, %v895
    %v897 = vadd.f32 %v892, %v896
    %v898 = vsel %vm423, %v897, %v870
    %v899 = vld [vmem:[%s4 + $0x13] sm:$0x1]
    %v900 = vlaneseq
    %v901 = vshrl.u32 %v900, 7
    %v902 = vsub.s32 0, %v901
    %v903 = vrot.slane %v899, %v902
    %v905 = vsel %vm157, %v898, 0
    %907 = vmatprep.subr.mxu0 0.0
    %908 = vmatpush1.msra.mxu0 %v659
    %909 = vmatprep.subr.mxu0 0.0
    %910 = vmatpush1.msra.mxu0 %v660
    %911 = vmatprep.subr.mxu0 0.0
    %912 = vmatpush1.msra.mxu0 %v661
    %913 = vmatprep.subr.mxu0 0.0
    %914 = vmatpush1.msra.mxu0 %v662
    %915 = vmatprep.subr.mxu0 0.0
    %916 = vmatpush1.msra.mxu0 %v663
    %917 = vmatprep.subr.mxu0 0.0
    %918 = vmatpush1.msra.mxu0 %v664
    %919 = vmatprep.subr.mxu0 0.0
    %920 = vmatpush1.msra.mxu0 %v665
    %921 = vmatprep.subr.mxu0 0.0
    %922 = vmatpush1.msra.mxu0 %v666
    %923 = vmatprep.subr.mxu0 0.0
    %924 = vmatpush1.msra.mxu0 0.0
    %925 = vmatprep.subr.mxu0 0.0
    %926 = vmatpush1.msra.mxu0 0.0
    %927 = vmatprep.subr.mxu0 0.0
    %928 = vmatpush1.msra.mxu0 0.0
    %929 = vmatprep.subr.mxu0 0.0
    %930 = vmatpush1.msra.mxu0 0.0
    %931 = vmatprep.subr.mxu0 0.0
    %932 = vmatpush1.msra.mxu0 0.0
    %933 = vmatprep.subr.mxu0 0.0
    %934 = vmatpush1.msra.mxu0 0.0
    %935 = vmatprep.subr.mxu0 0.0
    %936 = vmatpush1.msra.mxu0 0.0
    %937 = vmatprep.subr.mxu0 0.0
    %938 = vmatpush1.msra.mxu0 0.0
    %939 = vmatprep.subr.mxu0 0.0
    %940 = vmatpush1.msra.mxu0 0.0
    %941 = vmatprep.subr.mxu0 0.0
    %942 = vmatpush1.msra.mxu0 0.0
    %943 = vmatprep.subr.mxu0 0.0
    %944 = vmatpush1.msra.mxu0 0.0
    %945 = vmatprep.subr.mxu0 0.0
    %946 = vmatpush1.msra.mxu0 0.0
    %947 = vmatprep.subr.mxu0 0.0
    %948 = vmatpush1.msra.mxu0 0.0
    %949 = vmatprep.subr.mxu0 0.0
    %950 = vmatpush1.msra.mxu0 0.0
    %951 = vmatprep.subr.mxu0 0.0
    %952 = vmatpush1.msra.mxu0 0.0
    %953 = vmatprep.subr.mxu0 0.0
    %954 = vmatpush1.msra.mxu0 0.0
    %955 = vmatprep.subr.mxu0 0.0
    %956 = vmatpush1.msra.mxu0 0.0
    %957 = vmatprep.subr.mxu0 0.0
    %958 = vmatpush1.msra.mxu0 0.0
    %959 = vmatprep.subr.mxu0 0.0
    %960 = vmatpush1.msra.mxu0 0.0
    %961 = vmatprep.subr.mxu0 0.0
    %962 = vmatpush1.msra.mxu0 0.0
    %963 = vmatprep.subr.mxu0 0.0
    %964 = vmatpush1.msra.mxu0 0.0
    %965 = vmatprep.subr.mxu0 0.0
    %966 = vmatpush1.msra.mxu0 0.0
    %967 = vmatprep.subr.mxu0 0.0
    %968 = vmatpush1.msra.mxu0 0.0
    %969 = vmatprep.subr.mxu0 0.0
    %970 = vmatpush1.msra.mxu0 0.0
    %971 = vmatprep.mubr.f32.mxu0 0.0
    %972 = vmatmul.mubr.f32.gmra.mrb[0].mxu0 %v905
    %v973 = vpop.f32.mrb[0].mxu0
    %v974 = vadd.f32 %v903, %v973
    %v975 = vpop.f32.mrb[0].mxu0
    %976 = vdwg.mxu0
    %v977 = vmax.f32 %v974, 0.0
    %978 = vmatprep.subr.mxu0 0.0
    %979 = vmatpush1.msra.mxu0 %v667
    %980 = vmatprep.subr.mxu0 0.0
    %981 = vmatpush1.msra.mxu0 %v668
    %982 = vmatprep.subr.mxu0 0.0
    %983 = vmatpush1.msra.mxu0 %v669
    %984 = vmatprep.subr.mxu0 0.0
    %985 = vmatpush1.msra.mxu0 %v670
    %986 = vmatprep.subr.mxu0 0.0
    %987 = vmatpush1.msra.mxu0 %v671
    %988 = vmatprep.subr.mxu0 0.0
    %989 = vmatpush1.msra.mxu0 %v672
    %990 = vmatprep.subr.mxu0 0.0
    %991 = vmatpush1.msra.mxu0 %v673
    %992 = vmatprep.subr.mxu0 0.0
    %993 = vmatpush1.msra.mxu0 %v674
    %994 = vmatprep.subr.mxu0 0.0
    %995 = vmatpush1.msra.mxu0 %v675
    %996 = vmatprep.subr.mxu0 0.0
    %997 = vmatpush1.msra.mxu0 %v676
    %998 = vmatprep.subr.mxu0 0.0
    %999 = vmatpush1.msra.mxu0 %v677
    %1000 = vmatprep.subr.mxu0 0.0
    %1001 = vmatpush1.msra.mxu0 %v678
    %1002 = vmatprep.subr.mxu0 0.0
    %1003 = vmatpush1.msra.mxu0 %v679
    %1004 = vmatprep.subr.mxu0 0.0
    %1005 = vmatpush1.msra.mxu0 %v680
    %1006 = vmatprep.subr.mxu0 0.0
    %1007 = vmatpush1.msra.mxu0 %v681
    %1008 = vmatprep.subr.mxu0 0.0
    %1009 = vmatpush1.msra.mxu0 %v682
    %1010 = vmatprep.subr.mxu0 0.0
    %1011 = vmatpush1.msra.mxu0 0.0
    %1012 = vmatprep.subr.mxu0 0.0
    %1013 = vmatpush1.msra.mxu0 0.0
    %1014 = vmatprep.subr.mxu0 0.0
    %1015 = vmatpush1.msra.mxu0 0.0
    %1016 = vmatprep.subr.mxu0 0.0
    %1017 = vmatpush1.msra.mxu0 0.0
    %1018 = vmatprep.subr.mxu0 0.0
    %1019 = vmatpush1.msra.mxu0 0.0
    %1020 = vmatprep.subr.mxu0 0.0
    %1021 = vmatpush1.msra.mxu0 0.0
    %1022 = vmatprep.subr.mxu0 0.0
    %1023 = vmatpush1.msra.mxu0 0.0
    %1024 = vmatprep.subr.mxu0 0.0
    %1025 = vmatpush1.msra.mxu0 0.0
    %1026 = vmatprep.subr.mxu0 0.0
    %1027 = vmatpush1.msra.mxu0 0.0
    %1028 = vmatprep.subr.mxu0 0.0
    %1029 = vmatpush1.msra.mxu0 0.0
    %1030 = vmatprep.subr.mxu0 0.0
    %1031 = vmatpush1.msra.mxu0 0.0
    %1032 = vmatprep.subr.mxu0 0.0
    %1033 = vmatpush1.msra.mxu0 0.0
    %1034 = vmatprep.subr.mxu0 0.0
    %1035 = vmatpush1.msra.mxu0 0.0
    %1036 = vmatprep.subr.mxu0 0.0
    %1037 = vmatpush1.msra.mxu0 0.0
    %1038 = vmatprep.subr.mxu0 0.0
    %1039 = vmatpush1.msra.mxu0 0.0
    %1040 = vmatprep.subr.mxu0 0.0
    %1041 = vmatpush1.msra.mxu0 0.0
    %1042 = vmatprep.mubr.f32.mxu0 0.0
    %1043 = vmatmul.mubr.f32.gmra.mrb[0].mxu0 %v977
    %v1044 = vpop.f32.mrb[0].mxu0
    %v1045 = vadd.f32 0.0, %v1044
    %v1046 = vpop.f32.mrb[0].mxu0
    %1047 = vdwg.mxu0
    %v1048 = vadd.f32 %v898, %v1045
    %v1049 = vld [vmem:[%s4 + $0x14] sm:$0x1]
    %v1050 = vlaneseq
    %v1051 = vshrl.u32 %v1050, 7
    %v1052 = vsub.s32 0, %v1051
    %v1053 = vrot.slane %v1049, %v1052
    %v1054 = vadd.f32 %v1048, %v1053
    %v1055 = vld [vmem:[%s4 + $0x15] sm:$0x1]
    %v1056 = vld [vmem:[%s4 + $0x16] sm:$0x1]
    %v1057 = vsel %vm155, %v1054, 0.0
    %v1058 = vsel %vm157, %v1057, 0.0
    %1059 = vadd.xlane.f32.xlu0 %v1058
    %v1060 = vpop.xlane.xlu0 %1059
    %v1061 = vsel %vm157, %v1054, 0.0
    %1062 = vadd.xlane.f32.xlu0 %v1061
    %v1063 = vpop.xlane.xlu0 %1062
    %v1064 = vsub.f32 %v1063, %v1060
    %v1065 = vsel %vm155, %v1060, %v1064
    %v1066 = vmul.f32 %v1065, 0.03125
    %v1067 = vsub.f32 %v1054, %v1066
    %v1068 = vmul.f32 %v1067, %v1067
    %v1069 = vsel %vm155, %v1068, 0.0
    %v1070 = vsel %vm157, %v1069, 0.0
    %1071 = vadd.xlane.f32.xlu0 %v1070
    %v1072 = vpop.xlane.xlu0 %1071
    %v1073 = vsel %vm157, %v1068, 0.0
    %1074 = vadd.xlane.f32.xlu0 %v1073
    %v1075 = vpop.xlane.xlu0 %1074
    %v1076 = vsub.f32 %v1075, %v1072
    %v1077 = vsel %vm155, %v1072, %v1076
    %v1078 = vmul.f32 %v1077, 0.03125
    %v1079 = vadd.f32 %v1078, 1e-05
    %v1080 = vrsqrt.pop %v1079
    %v1081 = vmul.f32 %v1067, %v1080
    %v1082 = vlaneseq
    %v1083 = vshrl.u32 %v1082, 7
    %v1084 = vsub.s32 0, %v1083
    %v1085 = vrot.slane %v1055, %v1084
    %v1086 = vmul.f32 %v1081, %v1085
    %v1087 = vlaneseq
    %v1088 = vshrl.u32 %v1087, 7
    %v1089 = vsub.s32 0, %v1088
    %v1090 = vrot.slane %v1056, %v1089
    %v1091 = vadd.f32 %v1086, %v1090
    %v1092 = vsel %vm157, %v1091, 0.0
    %1093 = vadd.xlane.f32.xlu0 %v1092
    %v1094 = vpop.xlane.xlu0 %1093
    %v1095 = vmul.f32 %v1094, 0.015625
    %v1096 = vsub.f32 %v1091, %v1095
    %v1097 = vmul.f32 %v1096, %v1096
    %v1098 = vsel %vm157, %v1097, 0.0
    %1099 = vadd.xlane.f32.xlu0 %v1098
    %v1100 = vpop.xlane.xlu0 %1099
    %v1101 = vmul.f32 %v1100, 0.015625
    %v1102 = vadd.f32 %v1101, 1e-05
    %v1103 = vrsqrt.pop %v1102
    %v1104 = vmul.f32 %v1096, %v1103
    %v1105 = vld [vmem:[#allocation6] sm:$0xff]
    %v1106 = vld [vmem:[#allocation6 + $0x8] sm:$0xff]
    %v1107 = vld [vmem:[#allocation6 + $0x10] sm:$0xff]
    %v1108 = vld [vmem:[#allocation6 + $0x18] sm:$0xff]
    %v1109 = vld [vmem:[#allocation6 + $0x20] sm:$0xff]
    %v1110 = vld [vmem:[#allocation6 + $0x28] sm:$0xff]
    %v1111 = vld [vmem:[#allocation6 + $0x30] sm:$0xff]
    %v1112 = vld [vmem:[#allocation6 + $0x38] sm:$0xff]
    %v1113 = vld [vmem:[%s4 + $0x17] sm:$0x1]
    %v1114 = vlaneseq
    %v1115 = vshrl.u32 %v1114, 7
    %v1116 = vsub.s32 0, %v1115
    %v1117 = vrot.slane %v1113, %v1116
    %v1119 = vsel %vm157, %v1104, 0
    %1121 = vmatprep.subr.mxu0 0.0
    %1122 = vmatpush1.msra.mxu0 %v1105
    %1123 = vmatprep.subr.mxu0 0.0
    %1124 = vmatpush1.msra.mxu0 %v1106
    %1125 = vmatprep.subr.mxu0 0.0
    %1126 = vmatpush1.msra.mxu0 %v1107
    %1127 = vmatprep.subr.mxu0 0.0
    %1128 = vmatpush1.msra.mxu0 %v1108
    %1129 = vmatprep.subr.mxu0 0.0
    %1130 = vmatpush1.msra.mxu0 %v1109
    %1131 = vmatprep.subr.mxu0 0.0
    %1132 = vmatpush1.msra.mxu0 %v1110
    %1133 = vmatprep.subr.mxu0 0.0
    %1134 = vmatpush1.msra.mxu0 %v1111
    %1135 = vmatprep.subr.mxu0 0.0
    %1136 = vmatpush1.msra.mxu0 %v1112
    %1137 = vmatprep.subr.mxu0 0.0
    %1138 = vmatpush1.msra.mxu0 0.0
    %1139 = vmatprep.subr.mxu0 0.0
    %1140 = vmatpush1.msra.mxu0 0.0
    %1141 = vmatprep.subr.mxu0 0.0
    %1142 = vmatpush1.msra.mxu0 0.0
    %1143 = vmatprep.subr.mxu0 0.0
    %1144 = vmatpush1.msra.mxu0 0.0
    %1145 = vmatprep.subr.mxu0 0.0
    %1146 = vmatpush1.msra.mxu0 0.0
    %1147 = vmatprep.subr.mxu0 0.0
    %1148 = vmatpush1.msra.mxu0 0.0
    %1149 = vmatprep.subr.mxu0 0.0
    %1150 = vmatpush1.msra.mxu0 0.0
    %1151 = vmatprep.subr.mxu0 0.0
    %1152 = vmatpush1.msra.mxu0 0.0
    %1153 = vmatprep.subr.mxu0 0.0
    %1154 = vmatpush1.msra.mxu0 0.0
    %1155 = vmatprep.subr.mxu0 0.0
    %1156 = vmatpush1.msra.mxu0 0.0
    %1157 = vmatprep.subr.mxu0 0.0
    %1158 = vmatpush1.msra.mxu0 0.0
    %1159 = vmatprep.subr.mxu0 0.0
    %1160 = vmatpush1.msra.mxu0 0.0
    %1161 = vmatprep.subr.mxu0 0.0
    %1162 = vmatpush1.msra.mxu0 0.0
    %1163 = vmatprep.subr.mxu0 0.0
    %1164 = vmatpush1.msra.mxu0 0.0
    %1165 = vmatprep.subr.mxu0 0.0
    %1166 = vmatpush1.msra.mxu0 0.0
    %1167 = vmatprep.subr.mxu0 0.0
    %1168 = vmatpush1.msra.mxu0 0.0
    %1169 = vmatprep.subr.mxu0 0.0
    %1170 = vmatpush1.msra.mxu0 0.0
    %1171 = vmatprep.subr.mxu0 0.0
    %1172 = vmatpush1.msra.mxu0 0.0
    %1173 = vmatprep.subr.mxu0 0.0
    %1174 = vmatpush1.msra.mxu0 0.0
    %1175 = vmatprep.subr.mxu0 0.0
    %1176 = vmatpush1.msra.mxu0 0.0
    %1177 = vmatprep.subr.mxu0 0.0
    %1178 = vmatpush1.msra.mxu0 0.0
    %1179 = vmatprep.subr.mxu0 0.0
    %1180 = vmatpush1.msra.mxu0 0.0
    %1181 = vmatprep.subr.mxu0 0.0
    %1182 = vmatpush1.msra.mxu0 0.0
    %1183 = vmatprep.subr.mxu0 0.0
    %1184 = vmatpush1.msra.mxu0 0.0
    %1185 = vmatprep.mubr.f32.mxu0 0.0
    %1186 = vmatmul.mubr.f32.gmra.mrb[0].mxu0 %v1119
    %v1187 = vpop.f32.mrb[0].mxu0
    %v1188 = vadd.f32 %v1117, %v1187
    %v1189 = vpop.f32.mrb[0].mxu0
    %1190 = vdwg.mxu0
    %v1191 = vmax.f32 %v1188, 0.0
    %v1192 = vld [vmem:[#allocation6 + $0x40] sm:$0xff]
    %v1193 = vld [vmem:[#allocation6 + $0x48] sm:$0xff]
    %v1194 = vld [vmem:[#allocation6 + $0x50] sm:$0xff]
    %v1195 = vld [vmem:[#allocation6 + $0x58] sm:$0xff]
    %v1196 = vld [vmem:[%s4 + $0x18] sm:$0x1]
    %v1197 = vlaneseq
    %v1198 = vshrl.u32 %v1197, 7
    %v1199 = vsub.s32 0, %v1198
    %v1200 = vrot.slane %v1196, %v1199
    %vm1201 = vcmask 261120
    %v1203 = vsel %vm1201, %v1191, 0
    %1205 = vmatprep.subr.mxu0 0.0
    %1206 = vmatpush1.msra.mxu0 %v1192
    %1207 = vmatprep.subr.mxu0 0.0
    %1208 = vmatpush1.msra.mxu0 %v1193
    %1209 = vmatprep.subr.mxu0 0.0
    %1210 = vmatpush1.msra.mxu0 %v1194
    %1211 = vmatprep.subr.mxu0 0.0
    %1212 = vmatpush1.msra.mxu0 %v1195
    %1213 = vmatprep.subr.mxu0 0.0
    %1214 = vmatpush1.msra.mxu0 0.0
    %1215 = vmatprep.subr.mxu0 0.0
    %1216 = vmatpush1.msra.mxu0 0.0
    %1217 = vmatprep.subr.mxu0 0.0
    %1218 = vmatpush1.msra.mxu0 0.0
    %1219 = vmatprep.subr.mxu0 0.0
    %1220 = vmatpush1.msra.mxu0 0.0
    %1221 = vmatprep.subr.mxu0 0.0
    %1222 = vmatpush1.msra.mxu0 0.0
    %1223 = vmatprep.subr.mxu0 0.0
    %1224 = vmatpush1.msra.mxu0 0.0
    %1225 = vmatprep.subr.mxu0 0.0
    %1226 = vmatpush1.msra.mxu0 0.0
    %1227 = vmatprep.subr.mxu0 0.0
    %1228 = vmatpush1.msra.mxu0 0.0
    %1229 = vmatprep.subr.mxu0 0.0
    %1230 = vmatpush1.msra.mxu0 0.0
    %1231 = vmatprep.subr.mxu0 0.0
    %1232 = vmatpush1.msra.mxu0 0.0
    %1233 = vmatprep.subr.mxu0 0.0
    %1234 = vmatpush1.msra.mxu0 0.0
    %1235 = vmatprep.subr.mxu0 0.0
    %1236 = vmatpush1.msra.mxu0 0.0
    %1237 = vmatprep.subr.mxu0 0.0
    %1238 = vmatpush1.msra.mxu0 0.0
    %1239 = vmatprep.subr.mxu0 0.0
    %1240 = vmatpush1.msra.mxu0 0.0
    %1241 = vmatprep.subr.mxu0 0.0
    %1242 = vmatpush1.msra.mxu0 0.0
    %1243 = vmatprep.subr.mxu0 0.0
    %1244 = vmatpush1.msra.mxu0 0.0
    %1245 = vmatprep.subr.mxu0 0.0
    %1246 = vmatpush1.msra.mxu0 0.0
    %1247 = vmatprep.subr.mxu0 0.0
    %1248 = vmatpush1.msra.mxu0 0.0
    %1249 = vmatprep.subr.mxu0 0.0
    %1250 = vmatpush1.msra.mxu0 0.0
    %1251 = vmatprep.subr.mxu0 0.0
    %1252 = vmatpush1.msra.mxu0 0.0
    %1253 = vmatprep.subr.mxu0 0.0
    %1254 = vmatpush1.msra.mxu0 0.0
    %1255 = vmatprep.subr.mxu0 0.0
    %1256 = vmatpush1.msra.mxu0 0.0
    %1257 = vmatprep.subr.mxu0 0.0
    %1258 = vmatpush1.msra.mxu0 0.0
    %1259 = vmatprep.subr.mxu0 0.0
    %1260 = vmatpush1.msra.mxu0 0.0
    %1261 = vmatprep.subr.mxu0 0.0
    %1262 = vmatpush1.msra.mxu0 0.0
    %1263 = vmatprep.subr.mxu0 0.0
    %1264 = vmatpush1.msra.mxu0 0.0
    %1265 = vmatprep.subr.mxu0 0.0
    %1266 = vmatpush1.msra.mxu0 0.0
    %1267 = vmatprep.subr.mxu0 0.0
    %1268 = vmatpush1.msra.mxu0 0.0
    %1269 = vmatprep.mubr.f32.mxu0 0.0
    %1270 = vmatmul.mubr.f32.gmra.mrb[0].mxu0 %v1203
    %v1271 = vpop.f32.mrb[0].mxu0
    %v1272 = vadd.f32 %v1200, %v1271
    %v1273 = vpop.f32.mrb[0].mxu0
    %1274 = vdwg.mxu0
    %1275 = vst [vmem:[%s5] sm:$0xff] %v1272
    // Predicated region
    $region34: #{simplified_transformer_forward.1} parent=1 // pred_check
      _
    $region35: #{simplified_transformer_forward.1} parent=1 // pred_check_branch
      %1277 = sbr.rel (0) target = $region37
    $region36: #{simplified_transformer_forward.1} parent=1 // pred_region
      _
    $region37: #{simplified_transformer_forward.1} parent=1 // pred_fallthru
      _
    // Predicated region
    $region38: #{simplified_transformer_forward.1} parent=1 // pred_check
      _
    $region39: #{simplified_transformer_forward.1} parent=1 // pred_check_branch
      %1279 = sbr.rel (0) target = $region41
    $region40: #{simplified_transformer_forward.1} parent=1 // pred_region
      _
    $region41: #{simplified_transformer_forward.1} parent=1 // pred_fallthru
      _
    %1280 = vsyncpa [#allocation3], 1
    %1281 = vsyncpa [#allocation5], 1

</llo_original>
